<compile_context>
chip_gen: v6e
topology: v6e:2x2x1
jax: 0.10.0
libtpu: 0.0.40
codegen_flags: <defaults>
</compile_context>

<pallas_src>
import jax
import jax.numpy as jnp
from jax.experimental import pallas as pl
from jax.experimental.pallas import tpu as pltpu


# ---------------------------------------------------------------------------
# helpers
# ---------------------------------------------------------------------------
def _round_up(x, m):
    return ((x + m - 1) // m) * m


def _pad2(a, rows, cols):
    pr = rows - a.shape[0]
    pc = cols - a.shape[1]
    if pr == 0 and pc == 0:
        return a
    return jnp.pad(a, ((0, pr), (0, pc)))


# ---------------------------------------------------------------------------
# Pallas kernels
# ---------------------------------------------------------------------------
def _encode_blend_project_kernel(ahat_ref, x_ref, w1_ref, w2_ref, tok_ref,
                                 s_ref, out_ref, acc_ref):
    """Stage 1: pre = blend(W_e2d(Ahat @ mask_x)) @ W_d2c.

    grid = (row tiles, reduction tiles over Ahat columns).
    """
    k = pl.program_id(1)

    @pl.when(k == 0)
    def _():
        acc_ref[...] = jnp.zeros_like(acc_ref)

    # Es tile accumulation (bf16 MXU operands, f32 accumulate)
    acc_ref[...] += jnp.dot(ahat_ref[...], x_ref[...],
                            preferred_element_type=jnp.float32)

    @pl.when(k == pl.num_programs(1) - 1)
    def _():
        es = acc_ref[...].astype(jnp.bfloat16)                 # [tm, D]
        origin = jnp.dot(es, w1_ref[...],
                         preferred_element_type=jnp.float32)   # [tm, H]
        s = s_ref[...]                                         # [tm, 1] f32
        tok = tok_ref[...]                                     # [1, H]  f32
        # mean over remask rounds collapsed:  origin + s*(tok - origin)
        blended = origin + s * (tok - origin)                  # f32 VPU blend
        pre = jnp.dot(blended.astype(jnp.bfloat16), w2_ref[...],
                      preferred_element_type=jnp.float32)      # [tm, Hc]
        out_ref[...] = pre.astype(out_ref.dtype)               # bf16 out


def _propagate_kernel(ahat_ref, pre_ref, out_ref):
    """Stage 2: out = Ahat @ pre  (accumulate into resident f32 output)."""
    k = pl.program_id(1)

    @pl.when(k == 0)
    def _():
        out_ref[...] = jnp.zeros_like(out_ref)

    out_ref[...] += jnp.dot(ahat_ref[...], pre_ref[...],
                            preferred_element_type=jnp.float32)


# ---------------------------------------------------------------------------
# wrapper
# ---------------------------------------------------------------------------
def autoencoder_forward_pallas(ahat, mask_x, w_e2d_t, remask, dec_mask_token,
                               w_d2c_t, num_remasking, *, tm=128, tk=128):
    """Full forward.  remask is [R, N] in {0, 1} (NOT pre-broadcast).

    tm/tk = 128 works on all chips; raise to 256/512 on v6e (budget against
    128 MiB VMEM) and keep double-buffered residency under 64 MiB on v7x.
    """
    N = ahat.shape[0]
    D = mask_x.shape[1]
    H = w_e2d_t.shape[1]
    Hc = w_d2c_t.shape[1]
    assert w_e2d_t.shape[0] == D
    # module constraint: decoder_to_contrastive(in_dim) applied to [N, hidden]
    assert w_d2c_t.shape[0] == H, "module requires in_dim == hidden_dim"

    f32, bf16 = jnp.float32, jnp.bfloat16

    # pad to tile-aligned rows and 128-lane-dense feature dims
    Np = _round_up(N, max(tm, tk))
    Dp = _round_up(D, 128)
    Hp = _round_up(H, 128)
    Hcp = _round_up(Hc, 128)

    ahat_p = _pad2(ahat, Np, Np).astype(bf16)
    x_p = _pad2(mask_x, Np, Dp).astype(bf16)
    w1_p = _pad2(w_e2d_t, Dp, Hp).astype(bf16)
    w2_p = _pad2(w_d2c_t, Hp, Hcp).astype(bf16)
    tok_p = _pad2(dec_mask_token.astype(f32), 1, Hp)

    # per-node remask fraction with the 1/R already folded in:
    #   mean_r rep_r = origin + (sum_r m_r / R) * (dec_tok - origin)
    s = remask.astype(f32).sum(axis=0) / float(num_remasking)          # [N]
    s_p = jnp.pad(s, (0, Np - N)).reshape(Np, 1)                       # [Np,1]

    grid = (Np // tm, Np // tk)
    dims = ("parallel", "arbitrary")

    # ---- stage 1: Es -> origin -> blend -> project -------------------------
    flops1 = 2 * Np * Np * Dp + 2 * Np * Dp * Hp + 2 * Np * Hp * Hcp
    bytes1 = (Np * Np + Np * Dp + Dp * Hp + Hp * Hcp + Np * Hcp) * 2 \
        + (Hp + Np) * 4
    pre = pl.pallas_call(
        _encode_blend_project_kernel,
        out_shape=jax.ShapeDtypeStruct((Np, Hcp), bf16),
        grid_spec=pltpu.PrefetchScalarGridSpec(
            num_scalar_prefetch=0,
            grid=grid,
            in_specs=[
                pl.BlockSpec((tm, tk), lambda i, k: (i, k)),    # Ahat tile
                pl.BlockSpec((tk, Dp), lambda i, k: (k, 0)),    # mask_x tile
                pl.BlockSpec((Dp, Hp), lambda i, k: (0, 0)),    # W_e2d
                pl.BlockSpec((Hp, Hcp), lambda i, k: (0, 0)),   # W_d2c
                pl.BlockSpec((1, Hp), lambda i, k: (0, 0)),     # dec_mask_token
                pl.BlockSpec((tm, 1), lambda i, k: (i, 0)),     # remask fraction
            ],
            out_specs=pl.BlockSpec((tm, Hcp), lambda i, k: (i, 0)),
            scratch_shapes=[pltpu.VMEM((tm, Dp), f32)],
        ),
        compiler_params=pltpu.CompilerParams(dimension_semantics=dims),
        cost_estimate=pl.CostEstimate(flops=int(flops1), transcendentals=0,
                                      bytes_accessed=int(bytes1)),
    )(ahat_p, x_p, w1_p, w2_p, tok_p, s_p)

    # ---- stage 2: out = Ahat @ pre ------------------------------------------
    flops2 = 2 * Np * Np * Hcp
    bytes2 = (Np * Np + Np * Hcp) * 2 + Np * Hcp * 4
    out_p = pl.pallas_call(
        _propagate_kernel,
        out_shape=jax.ShapeDtypeStruct((Np, Hcp), f32),
        grid_spec=pltpu.PrefetchScalarGridSpec(
            num_scalar_prefetch=0,
            grid=grid,
            in_specs=[
                pl.BlockSpec((tm, tk), lambda i, k: (i, k)),    # Ahat tile
                pl.BlockSpec((tk, Hcp), lambda i, k: (k, 0)),   # pre tile
            ],
            out_specs=pl.BlockSpec((tm, Hcp), lambda i, k: (i, 0)),
        ),
        compiler_params=pltpu.CompilerParams(dimension_semantics=dims),
        cost_estimate=pl.CostEstimate(flops=int(flops2), transcendentals=0,
                                      bytes_accessed=int(bytes2)),
    )(ahat_p, pre)

    return out_p[:N, :Hc]


# ---------------------------------------------------------------------------
# references for correctness checking
# ---------------------------------------------------------------------------
def autoencoder_forward_ref_bf16(ahat, mask_x, w_e2d_t, remask, dec_mask_token,
                                 w_d2c_t, num_remasking):
    """Mirrors the kernel's bf16-operand / f32-accumulate math exactly."""
    bf = jnp.bfloat16
    es = jnp.dot(ahat.astype(bf), mask_x.astype(bf),
                 preferred_element_type=jnp.float32)
    origin = jnp.dot(es.astype(bf), w_e2d_t.astype(bf),
                     preferred_element_type=jnp.float32)
    s = (remask.astype(jnp.float32).sum(0) / float(num_remasking))[:, None]
    blended = origin + s * (dec_mask_token.astype(jnp.float32) - origin)
    pre = jnp.dot(blended.astype(bf), w_d2c_t.astype(bf),
                  preferred_element_type=jnp.float32)
    return jnp.dot(ahat.astype(bf), pre.astype(bf),
                   preferred_element_type=jnp.float32)


def autoencoder_forward_ref_loop_f32(ahat, mask_x, w_e2d_t, remask,
                                     dec_mask_token, w_d2c_t, num_remasking):
    """Pure-f32 reference with the ORIGINAL per-round remask loop (validates
    the algebraic hoist against the module's scatter semantics)."""
    es = ahat @ mask_x
    origin = es @ w_e2d_t
    acc = jnp.zeros_like(origin)
    for r in range(num_remasking):
        m = remask[r][:, None]
        rep = origin * (1.0 - m) + m * dec_mask_token
        acc = acc + ahat @ rep
    ds = acc / float(num_remasking)
    return ds @ w_d2c_t


# ---------------------------------------------------------------------------
# glue: graph construction, masking noise, parameter init
# ---------------------------------------------------------------------------
def build_normalized_adjacency(key, n_nodes, edge_prob=0.15):
    # random undirected graph, GraphConv norm='both'
    a = (jax.random.uniform(key, (n_nodes, n_nodes)) < edge_prob)
    a = jnp.triu(a, k=1)
    a = (a | a.T).astype(jnp.float32)
    deg = a.sum(axis=1)
    # allow_zero_in_degree=True: zero-degree rows simply stay zero
    d_inv_sqrt = jnp.where(deg > 0, 1.0 / jnp.sqrt(jnp.maximum(deg, 1e-12)), 0.0)
    return a * d_inv_sqrt[:, None] * d_inv_sqrt[None, :]


if __name__ == "__main__":
    # small, lane-aligned shapes; in_dim must equal hidden_dim (module constraint)
    N = 256
    IN_DIM = 128
    HIDDEN_DIM = 128
    ENC_NUM_LAYER = 2          # parameter-free layers -> mean over stack is identity
    MASK_RATE = 0.3
    REMASK_RATE = 0.5
    NUM_REMASKING = 3

    root = jax.random.PRNGKey(0)
    k_g, k_x, k_etok, k_dtok, k_e2d, k_d2c, k_perm, k_re = jax.random.split(root, 8)

    # graph + node features
    ahat = build_normalized_adjacency(k_g, N)                       # [N, N]
    x = jax.random.normal(k_x, (N, IN_DIM), dtype=jnp.float32)      # [N, D]

    # parameters (deterministic, xavier-normal style as in reset_parameters_for_token)
    enc_mask_token = jax.random.normal(k_etok, (1, IN_DIM)) * jnp.sqrt(
        2.0 / (1 + IN_DIM))
    dec_mask_token = jax.random.normal(k_dtok, (1, HIDDEN_DIM)) * jnp.sqrt(
        2.0 / (1 + HIDDEN_DIM))
    # nn.Linear weight is [out, in]; forward is x @ W.T -> keep transposed form
    w_e2d_t = (1.414 * jnp.sqrt(2.0 / (IN_DIM + HIDDEN_DIM))
               * jax.random.normal(k_e2d, (IN_DIM, HIDDEN_DIM))).astype(jnp.float32)
    w_d2c_t = (jnp.sqrt(2.0 / (IN_DIM + HIDDEN_DIM))
               * jax.random.normal(k_d2c, (IN_DIM, HIDDEN_DIM))).astype(jnp.float32)

    # --- encoding_mask_noise (scatter glue, stays in JAX) --------------------
    num_mask = int(MASK_RATE * N)
    perm = jax.random.permutation(k_perm, N)
    mask_nodes = perm[:num_mask]
    enc_mask = jnp.zeros((N,), bool).at[mask_nodes].set(True)
    # out_x[mask] = 0 ; out_x[mask] += enc_mask_token  ==> out_x[mask] = token
    mask_x = jnp.where(enc_mask[:, None], enc_mask_token, x).astype(jnp.float32)

    # --- random_remask masks for each remasking round (kept as [R, N]) -------
    num_remask = int(REMASK_RATE * N)
    remask_masks = []
    for r in range(NUM_REMASKING):
        kr = jax.random.fold_in(k_re, r)
        perm_r = jax.random.permutation(kr, N)
        rm = jnp.zeros((N,), jnp.float32).at[perm_r[:num_remask]].set(1.0)
        remask_masks.append(rm)
    remask = jnp.stack(remask_masks)                                  # [R, N]

    # --- run kernel -----------------------------------------------------------
    out = autoencoder_forward_pallas(ahat, mask_x, w_e2d_t, remask,
                                     dec_mask_token, w_d2c_t, NUM_REMASKING)
    out = jax.block_until_ready(out)
    assert out.shape == (N, HIDDEN_DIM)

    # check vs bf16-mirrored math (tight) and vs f32 original-loop math (loose)
    ref_bf = autoencoder_forward_ref_bf16(ahat, mask_x, w_e2d_t, remask,
                                          dec_mask_token, w_d2c_t, NUM_REMASKING)
    ref_f32 = autoencoder_forward_ref_loop_f32(ahat, mask_x, w_e2d_t, remask,
                                               dec_mask_token, w_d2c_t,
                                               NUM_REMASKING)
    assert jnp.allclose(out, ref_bf, atol=5e-3, rtol=5e-3)
    assert jnp.allclose(out, ref_f32, atol=5e-2, rtol=5e-2)

    # TODO(synk): the module's self.decoder layers are constructed but never
    # used in forward(); nothing to translate for them.  drop_g1/drop_g2 are
    # assumed None (use_g == pre_use_g == g).
    print("KERNEL_OK")
</pallas_src>

<mosaic_0001>
module attributes {stable_mosaic.version = 11 : i64} {
  func.func @_encode_blend_project_kernel(%arg0: i32, %arg1: i32, %arg2: memref<128x128xbf16, #tpu.memory_space<vmem>>, %arg3: memref<128x128xbf16, #tpu.memory_space<vmem>>, %arg4: memref<128x128xbf16, #tpu.memory_space<vmem>>, %arg5: memref<128x128xbf16, #tpu.memory_space<vmem>>, %arg6: memref<1x128xf32, #tpu.memory_space<vmem>>, %arg7: memref<128x1xf32, #tpu.memory_space<vmem>>, %arg8: memref<128x128xbf16, #tpu.memory_space<vmem>>, %arg9: memref<128x128xf32, #tpu.memory_space<vmem>>) attributes {dimension_semantics = [#tpu.dimension_semantics<parallel>, #tpu.dimension_semantics<arbitrary>], iteration_bounds = array<i64: 2, 2>, scalar_prefetch = 0 : i64, scratch_operands = 1 : i64, tpu.core_type = #tpu.core_type<tc>, window_params = [{transform_indices = @transform_0, window_bounds = array<i64: 128, 128>}, {transform_indices = @transform_1, window_bounds = array<i64: 128, 128>}, {pipeline_mode = #tpu.pipeline_mode<synchronous>, transform_indices = @transform_2, window_bounds = array<i64: 128, 128>}, {pipeline_mode = #tpu.pipeline_mode<synchronous>, transform_indices = @transform_3, window_bounds = array<i64: 128, 128>}, {pipeline_mode = #tpu.pipeline_mode<synchronous>, transform_indices = @transform_4, window_bounds = array<i64: 1, 128>}, {transform_indices = @transform_5, window_bounds = array<i64: 128, 1>}, {transform_indices = @transform_6, window_bounds = array<i64: 128, 128>}]} {
    %c0_i32 = arith.constant 0 : i32
    %0 = arith.cmpi eq, %arg1, %c0_i32 : i32
    %1 = arith.extui %0 : i1 to i32
    %c0_i32_0 = arith.constant 0 : i32
    %2 = arith.cmpi ne, %1, %c0_i32_0 : i32
    scf.if %2 {
      %cst_9 = arith.constant 0.000000e+00 : f32
      %12 = vector.broadcast %cst_9 : f32 to vector<128x128xf32>
      %c0_10 = arith.constant 0 : index
      %c0_11 = arith.constant 0 : index
      %13 = vector.load %arg9[%c0_10, %c0_11] : memref<128x128xf32, #tpu.memory_space<vmem>>, vector<128x128xf32>
      tpu.vector_store %arg9[%c0_10, %c0_11], %12 {strides = array<i32>} : memref<128x128xf32, #tpu.memory_space<vmem>>, vector<128x128xf32>,
    } else {
    }
    %c0 = arith.constant 0 : index
    %c0_1 = arith.constant 0 : index
    %3 = vector.load %arg9[%c0, %c0_1] : memref<128x128xf32, #tpu.memory_space<vmem>>, vector<128x128xf32>
    %c0_2 = arith.constant 0 : index
    %c0_3 = arith.constant 0 : index
    %4 = vector.load %arg2[%c0_2, %c0_3] : memref<128x128xbf16, #tpu.memory_space<vmem>>, vector<128x128xbf16>
    %c0_4 = arith.constant 0 : index
    %c0_5 = arith.constant 0 : index
    %5 = vector.load %arg3[%c0_4, %c0_5] : memref<128x128xbf16, #tpu.memory_space<vmem>>, vector<128x128xbf16>
    %cst = arith.constant dense<0.000000e+00> : vector<128x128xf32>
    %6 = tpu.matmul %4, %5, %cst {dimension_numbers = #tpu.dot_dimension_numbers<[1], [0], [0], [1], [0, 0, 1, 1], [], []>} : vector<128x128xbf16>, vector<128x128xbf16>, vector<128x128xf32> -> vector<128x128xf32>
    %7 = arith.addf %3, %6 : vector<128x128xf32>
    %c0_6 = arith.constant 0 : index
    %c0_7 = arith.constant 0 : index
    %8 = vector.load %arg9[%c0_6, %c0_7] : memref<128x128xf32, #tpu.memory_space<vmem>>, vector<128x128xf32>
    tpu.vector_store %arg9[%c0_6, %c0_7], %7 {strides = array<i32>} : memref<128x128xf32, #tpu.memory_space<vmem>>, vector<128x128xf32>,
    %c1_i32 = arith.constant 1 : i32
    %9 = arith.cmpi eq, %arg1, %c1_i32 : i32
    %10 = arith.extui %9 : i1 to i32
    %c0_i32_8 = arith.constant 0 : i32
    %11 = arith.cmpi ne, %10, %c0_i32_8 : i32
    scf.if %11 {
      %c0_9 = arith.constant 0 : index
      %c0_10 = arith.constant 0 : index
      %12 = vector.load %arg9[%c0_9, %c0_10] : memref<128x128xf32, #tpu.memory_space<vmem>>, vector<128x128xf32>
      %13 = arith.truncf %12 : vector<128x128xf32> to vector<128x128xbf16>
      %c0_11 = arith.constant 0 : index
      %c0_12 = arith.constant 0 : index
      %14 = vector.load %arg4[%c0_11, %c0_12] : memref<128x128xbf16, #tpu.memory_space<vmem>>, vector<128x128xbf16>
      %cst_13 = arith.constant dense<0.000000e+00> : vector<128x128xf32>
      %15 = tpu.matmul %13, %14, %cst_13 {dimension_numbers = #tpu.dot_dimension_numbers<[1], [0], [0], [1], [0, 0, 1, 1], [], []>} : vector<128x128xbf16>, vector<128x128xbf16>, vector<128x128xf32> -> vector<128x128xf32>
      %c0_14 = arith.constant 0 : index
      %c0_15 = arith.constant 0 : index
      %16 = vector.load %arg7[%c0_14, %c0_15] : memref<128x1xf32, #tpu.memory_space<vmem>>, vector<128x1xf32>
      %c0_16 = arith.constant 0 : index
      %c0_17 = arith.constant 0 : index
      %17 = vector.load %arg6[%c0_16, %c0_17] : memref<1x128xf32, #tpu.memory_space<vmem>>, vector<1x128xf32>
      %18 = vector.broadcast %17 : vector<1x128xf32> to vector<128x128xf32>
      %19 = arith.subf %18, %15 : vector<128x128xf32>
      %20 = vector.broadcast %16 : vector<128x1xf32> to vector<128x128xf32>
      %21 = arith.mulf %20, %19 : vector<128x128xf32>
      %22 = arith.addf %15, %21 : vector<128x128xf32>
      %23 = arith.truncf %22 : vector<128x128xf32> to vector<128x128xbf16>
      %c0_18 = arith.constant 0 : index
      %c0_19 = arith.constant 0 : index
      %24 = vector.load %arg5[%c0_18, %c0_19] : memref<128x128xbf16, #tpu.memory_space<vmem>>, vector<128x128xbf16>
      %cst_20 = arith.constant dense<0.000000e+00> : vector<128x128xf32>
      %25 = tpu.matmul %23, %24, %cst_20 {dimension_numbers = #tpu.dot_dimension_numbers<[1], [0], [0], [1], [0, 0, 1, 1], [], []>} : vector<128x128xbf16>, vector<128x128xbf16>, vector<128x128xf32> -> vector<128x128xf32>
      %26 = arith.truncf %25 : vector<128x128xf32> to vector<128x128xbf16>
      %c0_21 = arith.constant 0 : index
      %c0_22 = arith.constant 0 : index
      %27 = vector.load %arg8[%c0_21, %c0_22] : memref<128x128xbf16, #tpu.memory_space<vmem>>, vector<128x128xbf16>
      tpu.vector_store %arg8[%c0_21, %c0_22], %26 {strides = array<i32>} : memref<128x128xbf16, #tpu.memory_space<vmem>>, vector<128x128xbf16>,
    } else {
    }
    return
  }
  func.func @transform_0(%arg0: i32, %arg1: i32) -> (i32, i32) {
    %c0_i32 = arith.constant 0 : i32
    return %arg0, %arg1 : i32, i32
  }
  func.func @transform_1(%arg0: i32, %arg1: i32) -> (i32, i32) {
    %c0_i32 = arith.constant 0 : i32
    %c0_i32_0 = arith.constant 0 : i32
    return %arg1, %c0_i32 : i32, i32
  }
  func.func @transform_2(%arg0: i32, %arg1: i32) -> (i32, i32) {
    %c0_i32 = arith.constant 0 : i32
    %c0_i32_0 = arith.constant 0 : i32
    %c0_i32_1 = arith.constant 0 : i32
    return %c0_i32, %c0_i32_0 : i32, i32
  }
  func.func @transform_3(%arg0: i32, %arg1: i32) -> (i32, i32) {
    %c0_i32 = arith.constant 0 : i32
    %c0_i32_0 = arith.constant 0 : i32
    %c0_i32_1 = arith.constant 0 : i32
    return %c0_i32, %c0_i32_0 : i32, i32
  }
  func.func @transform_4(%arg0: i32, %arg1: i32) -> (i32, i32) {
    %c0_i32 = arith.constant 0 : i32
    %c0_i32_0 = arith.constant 0 : i32
    %c0_i32_1 = arith.constant 0 : i32
    return %c0_i32, %c0_i32_0 : i32, i32
  }
  func.func @transform_5(%arg0: i32, %arg1: i32) -> (i32, i32) {
    %c0_i32 = arith.constant 0 : i32
    %c0_i32_0 = arith.constant 0 : i32
    return %arg0, %c0_i32 : i32, i32
  }
  func.func @transform_6(%arg0: i32, %arg1: i32) -> (i32, i32) {
    %c0_i32 = arith.constant 0 : i32
    %c0_i32_0 = arith.constant 0 : i32
    return %arg0, %c0_i32 : i32, i32
  }
}

</mosaic_0001>

<llo_original>
// kernel: tpu_custom_call.1
$region0: #{tpu_custom_call.1}
  #allocation0 [shape = 'u32[]', space=smem, size = 0x4, offset = 0x4, fixed_abs, tag = 'smem constant byte address 0x4 - core index']
  #allocation1 [shape = 'u32[144,128]{1,0:T(1,128)}', space=vmem, size = 0x12000, scoped, tag = 'internal scratch']
  #allocation2 [shape = 'f32[128,128]{1,0:T(8,128)}', space=vmem, size = 0x10000, scoped, tag = 'scratch operand']
  %s0 = inlined_call_operand.vmem [shape: bf16[256,256], index: 0, kind: input, shape index: {}]
  %s1 = inlined_call_operand.hbm [shape: bf16[256,128], index: 1, kind: input, shape index: {}]
  %s2 = inlined_call_operand.hbm [shape: bf16[128,128], index: 2, kind: input, shape index: {}]
  %s3 = inlined_call_operand.hbm [shape: bf16[128,128], index: 3, kind: input, shape index: {}]
  %s4 = inlined_call_operand.vmem [shape: f32[1,128], index: 4, kind: input, shape index: {}]
  %s5 = inlined_call_operand.vmem [shape: f32[256,1], index: 5, kind: input, shape index: {}]
  %s6 = inlined_call_operand.hbm [shape: bf16[256,128], index: 6, kind: output, shape index: {}]
  %s7 = sld [smem:[#allocation0]]
  $region118: #{tpu_custom_call.1} parent=0
    _
  %s9 = ssub.s32 1, %s7
  %s10 = scalar_select 0, %s9, %s7
  $region1: #{tpu_custom_call.1} parent=0
    #allocation3 [shape = 'u8[65536]{0}', space=vmem, size = 0x10000, scoped, tag = 'input window, operand 0']
    #allocation4 [shape = 'u8[65536]{0}', space=vmem, size = 0x10000, scoped, tag = 'input window, operand 1']
    #allocation5 [shape = 's32[2]{0}', space=sflag, size = 0x8, scoped, tag = 'scoped memory for tpu_custom_call.1']
    #allocation6 [shape = 's32[2]{0}', space=sflag, size = 0x8, scoped, tag = 'scoped memory for tpu_custom_call.1']
    #allocation7 [shape = 'u8[32768]{0}', space=vmem, size = 0x8000, scoped, tag = 'input window, operand 2, single buffered']
    #allocation8 [shape = 's32[1]{0}', space=sflag, size = 0x4, scoped, tag = 'scoped memory for tpu_custom_call.1']
    #allocation9 [shape = 'u8[32768]{0}', space=vmem, size = 0x8000, scoped, tag = 'input window, operand 3, single buffered']
    #allocation10 [shape = 'u8[65536]{0}', space=vmem, size = 0x10000, scoped, tag = 'output window, operand 0']
    %11 = vsyncpa [#allocation5], 0
    %s12 = scalar_lea.sflag [#allocation5], 1
    %13 = vsyncpa %s12, 0
    %14 = vsyncpa [#allocation8], 0
    %15 = vsyncpa [#allocation6], 0
    %s16 = scalar_lea.sflag [#allocation6], 1
    %17 = vsyncpa %s16, 0
    loop: start=0, step=1, limit=6
    $region2: #{tpu_custom_call.1} parent=1 // loop_pre_header
      _
    $region3: #{tpu_custom_call.1} parent=1 // loop_header
      %s19 = sphi 0, %s23
      %p20 = scmp.ge.s32.totalorder %s19, 6
      %s26 = sphi 0, %s38
      %s27 = sphi 0, %s34
      %s28 = sphi 0, %s26
      %s29 = sphi 0, %s27
      %s30 = sphi 0, %s28
      %s31 = sphi 0, %s29
      %s43 = sphi 0, %s45
      %s46 = sphi 0, %s43
      %s47 = sphi 0, %s46
      %s63 = sphi 0, %s47
      %s69 = sphi 0, %s71
      %s72 = sphi 0, %s69
      %s73 = sphi 0, %s72
      %s89 = sphi 0, %s73
      %s93 = sphi 0, %s93
      %s95 = sphi 0, %s93
      %s96 = sphi 0, %s95
      %s110 = sphi 0, %s96
      %s114 = sphi 0, %s114
      %s116 = sphi 0, %s114
      %s117 = sphi 0, %s116
      %s131 = sphi 0, %s117
      %s135 = sphi 0, %s135
      %s137 = sphi 0, %s135
      %s138 = sphi 0, %s137
      %s152 = sphi 0, %s138
      %s158 = sphi 0, %s160
      %s161 = sphi 0, %s158
      %s162 = sphi 0, %s161
      %s178 = sphi 0, %s162
      %s184 = sphi 0, %s186
      %s187 = sphi 0, %s184
      %s188 = sphi 0, %s187
      %s204 = sphi 0, %s188
    $region4: #{tpu_custom_call.1} parent=1 // loop_header_branch
      %22 = sbr.rel (%p20) target = $region8
    $region5: #{tpu_custom_call.1} parent=1 // loop_body
      %s24 = ssub.s32 %s19, 1
      %s25 = ssub.s32 %s19, 2
      %s32 = sadd.s32 1, %s27
      %p33 = scmp.ge.s32.totalorder %s32, 2
      %s34 = scalar_select %p33, 0, %s32
      %s35 = sadd.s32 1, %s26
      %s36 = scalar_select %p33, %s35, %s26
      %p37 = scmp.ge.s32.totalorder %s36, 2
      %s38 = scalar_select %p37, 0, %s36
      %s39 = ssub.s32 %s26, %s38
      %s40 = ssub.s32 %s27, %s34
      %s41 = sor.u32 %s39, %s40
      %p42 = scmp.eq.s32.totalorder %s41, 0
      %s44 = sadd.s32 %s43, 1
      %s45 = scalar_select %p42, %s43, %s44
      %p48 = pneg %p42
      %p49 = scmp.eq.s32.totalorder %s19, 3
      %p50 = por %p48, %p49
      %p51 = scmp.ne.s32.totalorder %s43, %s46
      %p52 = scmp.eq.s32.totalorder %s19, 0
      %p53 = por %p51, %p52
      %p54 = scmp.ne.s32.totalorder %s43, %s46
      %p55 = scmp.eq.s32.totalorder %s24, 3
      %p56 = por %p54, %p55
      %p57 = scmp.ne.s32.totalorder %s46, %s47
      %p58 = scmp.eq.s32.totalorder %s24, 0
      %p59 = por %p57, %p58
      %p60 = scmp.ne.s32.totalorder %s46, %s47
      %p61 = scmp.eq.s32.totalorder %s25, 3
      %p62 = por %p60, %p61
      %p64 = scmp.ne.s32.totalorder %s47, %s63
      %p65 = scmp.eq.s32.totalorder %s25, 0
      %p66 = por %p64, %p65
      %s67 = ssub.s32 %s27, %s34
      %p68 = scmp.eq.s32.totalorder %s67, 0
      %s70 = sadd.s32 %s69, 1
      %s71 = scalar_select %p68, %s69, %s70
      %p74 = pneg %p68
      %p75 = scmp.eq.s32.totalorder %s19, 3
      %p76 = por %p74, %p75
      %p77 = scmp.ne.s32.totalorder %s69, %s72
      %p78 = scmp.eq.s32.totalorder %s19, 0
      %p79 = por %p77, %p78
      %p80 = scmp.ne.s32.totalorder %s69, %s72
      %p81 = scmp.eq.s32.totalorder %s24, 3
      %p82 = por %p80, %p81
      %p83 = scmp.ne.s32.totalorder %s72, %s73
      %p84 = scmp.eq.s32.totalorder %s24, 0
      %p85 = por %p83, %p84
      %p86 = scmp.ne.s32.totalorder %s72, %s73
      %p87 = scmp.eq.s32.totalorder %s25, 3
      %p88 = por %p86, %p87
      %p90 = scmp.ne.s32.totalorder %s73, %s89
      %p91 = scmp.eq.s32.totalorder %s25, 0
      %p92 = por %p90, %p91
      %s94 = sadd.s32 %s93, 1
      %p97 = scmp.eq.s32.totalorder %s19, 3
      %p98 = scmp.ne.s32.totalorder %s93, %s95
      %p99 = scmp.eq.s32.totalorder %s19, 0
      %p100 = por %p98, %p99
      %p101 = scmp.ne.s32.totalorder %s93, %s95
      %p102 = scmp.eq.s32.totalorder %s24, 3
      %p103 = por %p101, %p102
      %p104 = scmp.ne.s32.totalorder %s95, %s96
      %p105 = scmp.eq.s32.totalorder %s24, 0
      %p106 = por %p104, %p105
      %p107 = scmp.ne.s32.totalorder %s95, %s96
      %p108 = scmp.eq.s32.totalorder %s25, 3
      %p109 = por %p107, %p108
      %p111 = scmp.ne.s32.totalorder %s96, %s110
      %p112 = scmp.eq.s32.totalorder %s25, 0
      %p113 = por %p111, %p112
      %s115 = sadd.s32 %s114, 1
      %p118 = scmp.eq.s32.totalorder %s19, 3
      %p119 = scmp.ne.s32.totalorder %s114, %s116
      %p120 = scmp.eq.s32.totalorder %s19, 0
      %p121 = por %p119, %p120
      %p122 = scmp.ne.s32.totalorder %s114, %s116
      %p123 = scmp.eq.s32.totalorder %s24, 3
      %p124 = por %p122, %p123
      %p125 = scmp.ne.s32.totalorder %s116, %s117
      %p126 = scmp.eq.s32.totalorder %s24, 0
      %p127 = por %p125, %p126
      %p128 = scmp.ne.s32.totalorder %s116, %s117
      %p129 = scmp.eq.s32.totalorder %s25, 3
      %p130 = por %p128, %p129
      %p132 = scmp.ne.s32.totalorder %s117, %s131
      %p133 = scmp.eq.s32.totalorder %s25, 0
      %p134 = por %p132, %p133
      %s136 = sadd.s32 %s135, 1
      %p139 = scmp.eq.s32.totalorder %s19, 3
      %p140 = scmp.ne.s32.totalorder %s135, %s137
      %p141 = scmp.eq.s32.totalorder %s19, 0
      %p142 = por %p140, %p141
      %p143 = scmp.ne.s32.totalorder %s135, %s137
      %p144 = scmp.eq.s32.totalorder %s24, 3
      %p145 = por %p143, %p144
      %p146 = scmp.ne.s32.totalorder %s137, %s138
      %p147 = scmp.eq.s32.totalorder %s24, 0
      %p148 = por %p146, %p147
      %p149 = scmp.ne.s32.totalorder %s137, %s138
      %p150 = scmp.eq.s32.totalorder %s25, 3
      %p151 = por %p149, %p150
      %p153 = scmp.ne.s32.totalorder %s138, %s152
      %p154 = scmp.eq.s32.totalorder %s25, 0
      %p155 = por %p153, %p154
      %s156 = ssub.s32 %s26, %s38
      %p157 = scmp.eq.s32.totalorder %s156, 0
      %s159 = sadd.s32 %s158, 1
      %s160 = scalar_select %p157, %s158, %s159
      %p163 = pneg %p157
      %p164 = scmp.eq.s32.totalorder %s19, 3
      %p165 = por %p163, %p164
      %p166 = scmp.ne.s32.totalorder %s158, %s161
      %p167 = scmp.eq.s32.totalorder %s19, 0
      %p168 = por %p166, %p167
      %p169 = scmp.ne.s32.totalorder %s158, %s161
      %p170 = scmp.eq.s32.totalorder %s24, 3
      %p171 = por %p169, %p170
      %p172 = scmp.ne.s32.totalorder %s161, %s162
      %p173 = scmp.eq.s32.totalorder %s24, 0
      %p174 = por %p172, %p173
      %p175 = scmp.ne.s32.totalorder %s161, %s162
      %p176 = scmp.eq.s32.totalorder %s25, 3
      %p177 = por %p175, %p176
      %p179 = scmp.ne.s32.totalorder %s162, %s178
      %p180 = scmp.eq.s32.totalorder %s25, 0
      %p181 = por %p179, %p180
      %s182 = ssub.s32 %s26, %s38
      %p183 = scmp.eq.s32.totalorder %s182, 0
      %s185 = sadd.s32 %s184, 1
      %s186 = scalar_select %p183, %s184, %s185
      %p189 = pneg %p183
      %p190 = scmp.eq.s32.totalorder %s19, 3
      %p191 = por %p189, %p190
      %p192 = scmp.ne.s32.totalorder %s184, %s187
      %p193 = scmp.eq.s32.totalorder %s19, 0
      %p194 = por %p192, %p193
      %p195 = scmp.ne.s32.totalorder %s184, %s187
      %p196 = scmp.eq.s32.totalorder %s24, 3
      %p197 = por %p195, %p196
      %p198 = scmp.ne.s32.totalorder %s187, %s188
      %p199 = scmp.eq.s32.totalorder %s24, 0
      %p200 = por %p198, %p199
      %p201 = scmp.ne.s32.totalorder %s187, %s188
      %p202 = scmp.eq.s32.totalorder %s25, 3
      %p203 = por %p201, %p202
      %p205 = scmp.ne.s32.totalorder %s188, %s204
      %p206 = scmp.eq.s32.totalorder %s25, 0
      %p207 = por %p205, %p206
      %p208 = scmp.le.s32.totalorder 1, %s19
      %p209 = scmp.lt.s32.totalorder %s19, 5
      %p210 = pnand %p208, %p209
      %p211 = pneg %p210
      // Predicated region
      $region9: #{tpu_custom_call.1} parent=5 // pred_check
        _
      $region10: #{tpu_custom_call.1} parent=5 // pred_check_branch
        %213 = sbr.rel (%p210) target = $region12
      $region11: #{tpu_custom_call.1} parent=5 // pred_region
        %s214 = ssub.s32 %s19, 1
        // Predicated region
        $region13: #{tpu_custom_call.1} parent=11 // pred_check
          %p215 = pneg %p106
        $region14: #{tpu_custom_call.1} parent=11 // pred_check_branch
          %217 = sbr.rel (%p215) target = $region16
        $region15: #{tpu_custom_call.1} parent=11 // pred_region
          %s219 = ssub.s32 1024, 1024
          %220 = vsyncadd [#allocation8], %s219
          %s221 = sshll.u32 [#allocation7], 4
          %s222 = int_to_ptr.vmem [resolvable:$true] %s221
          %227 = dma.hbm_to_vmem [thread:$0]  %s2, 1024, %s222, [#allocation8], 64, 64, 4
        $region16: #{tpu_custom_call.1} parent=11 // pred_fallthru
          _
        // Predicated region
        $region17: #{tpu_custom_call.1} parent=11 // pred_check
          %p228 = pneg %p127
        $region18: #{tpu_custom_call.1} parent=11 // pred_check_branch
          %230 = sbr.rel (%p228) target = $region20
        $region19: #{tpu_custom_call.1} parent=11 // pred_region
          %s232 = ssub.s32 1024, 1024
          %233 = vsyncadd [#allocation8], %s232
          %s234 = sshll.u32 [#allocation9], 4
          %s235 = int_to_ptr.vmem [resolvable:$true] %s234
          %240 = dma.hbm_to_vmem [thread:$0]  %s3, 1024, %s235, [#allocation8], 64, 64, 4
        $region20: #{tpu_custom_call.1} parent=11 // pred_fallthru
          _
        // Predicated region
        $region21: #{tpu_custom_call.1} parent=11 // pred_check
          %p241 = pneg %p148
        $region22: #{tpu_custom_call.1} parent=11 // pred_check_branch
          %243 = sbr.rel (%p241) target = $region24
        $region23: #{tpu_custom_call.1} parent=11 // pred_region
          _
        $region24: #{tpu_custom_call.1} parent=11 // pred_fallthru
          _
      $region12: #{tpu_custom_call.1} parent=5 // pred_fallthru
        _
      %p244 = scmp.lt.s32.totalorder %s19, 4
      // Predicated region
      $region25: #{tpu_custom_call.1} parent=5 // pred_check
        %p245 = pneg %p244
      $region26: #{tpu_custom_call.1} parent=5 // pred_check_branch
        %247 = sbr.rel (%p245) target = $region28
      $region27: #{tpu_custom_call.1} parent=5 // pred_region
        // Predicated region
        $region29: #{tpu_custom_call.1} parent=27 // pred_check
          %p248 = pneg %p53
        $region30: #{tpu_custom_call.1} parent=27 // pred_check_branch
          %250 = sbr.rel (%p248) target = $region32
        $region31: #{tpu_custom_call.1} parent=27 // pred_region
          %s251 = sand.u32 %s43, 1
          %s252 = sand.u32 %s43, 1
          %s253 = smul.addr %s252, 64
          %s254 = scalar_lea.vmem [#allocation3], %s253
          %s255 = smul.u32 16, %s26
          %s256 = smul.addr %s255, 2
          %s257 = sadd.s32 %s27, %s256
          %s258 = smul.addr %s257, 4
          %s259 = scalar_lea.vmem %s0, %s258
          // Predicated region
          $region33: #{tpu_custom_call.1} parent=31 // pred_check
            _
          $region34: #{tpu_custom_call.1} parent=31 // pred_check_branch
            %261 = sbr.rel (0) target = $region36
          $region35: #{tpu_custom_call.1} parent=31 // pred_region
            // Predicated region
            $region37: #{tpu_custom_call.1} parent=35 // pred_check
              _
            $region38: #{tpu_custom_call.1} parent=35 // pred_check_branch
              %263 = sbr.rel target = $region40
            $region39: #{tpu_custom_call.1} parent=35 // pred_region
              // Predicated region
              $region52: #{tpu_custom_call.1} parent=39 // pred_check
                _
              $region53: #{tpu_custom_call.1} parent=39 // pred_check_branch
                %309 = sbr.rel (0) target = $region55
              $region54: #{tpu_custom_call.1} parent=39 // pred_region
                loop: start=0, step=1, limit=1
                $region56: #{tpu_custom_call.1} parent=54 // loop_pre_header
                  _
                $region57: #{tpu_custom_call.1} parent=54 // loop_header
                  %s311 = sphi 0, %s315
                  %p312 = scmp.ge.s32.totalorder %s311, 1
                  %s316 = sphi %s259, %s259
                  %s317 = sphi %s254, %s254
                $region58: #{tpu_custom_call.1} parent=54 // loop_header_branch
                  %314 = sbr.rel (%p312) target = $region62
                $region59: #{tpu_custom_call.1} parent=54 // loop_body
                  _
                $region60: #{tpu_custom_call.1} parent=54 // loop_footer
                  %s315 = sadd.s32 1, %s311
                $region61: #{tpu_custom_call.1} parent=54 // loop_footer_branch
                  %310 = sbr.rel target = $region57
                $region62: #{tpu_custom_call.1} parent=54 // loop_exit
                  _
                %s319 = ssub.s32 16, 1
                loop: start=0, step=1, limit=1
                $region63: #{tpu_custom_call.1} parent=54 // loop_pre_header
                  _
                $region64: #{tpu_custom_call.1} parent=54 // loop_header
                  %s321 = sphi 0, %s325
                  %p322 = scmp.ge.s32.totalorder %s321, 1
                  %s326 = sphi %s259, %s259
                  %s327 = sphi %s254, %s254
                $region65: #{tpu_custom_call.1} parent=54 // loop_header_branch
                  %324 = sbr.rel (%p322) target = $region69
                $region66: #{tpu_custom_call.1} parent=54 // loop_body
                  %v328 = vld [vmem:[%s326] sm:%s319]
                  %329 = vst [vmem:[%s327] sm:%s319] %v328
                  %v330 = vld [vmem:[%s326 + $0x8] sm:%s319]
                  %331 = vst [vmem:[%s327 + $0x4] sm:%s319] %v330
                  %v332 = vld [vmem:[%s326 + $0x10] sm:%s319]
                  %333 = vst [vmem:[%s327 + $0x8] sm:%s319] %v332
                  %v334 = vld [vmem:[%s326 + $0x18] sm:%s319]
                  %335 = vst [vmem:[%s327 + $0xc] sm:%s319] %v334
                  %v336 = vld [vmem:[%s326 + $0x20] sm:%s319]
                  %337 = vst [vmem:[%s327 + $0x10] sm:%s319] %v336
                  %v338 = vld [vmem:[%s326 + $0x28] sm:%s319]
                  %339 = vst [vmem:[%s327 + $0x14] sm:%s319] %v338
                  %v340 = vld [vmem:[%s326 + $0x30] sm:%s319]
                  %341 = vst [vmem:[%s327 + $0x18] sm:%s319] %v340
                  %v342 = vld [vmem:[%s326 + $0x38] sm:%s319]
                  %343 = vst [vmem:[%s327 + $0x1c] sm:%s319] %v342
                  %v344 = vld [vmem:[%s326 + $0x40] sm:%s319]
                  %345 = vst [vmem:[%s327 + $0x20] sm:%s319] %v344
                  %v346 = vld [vmem:[%s326 + $0x48] sm:%s319]
                  %347 = vst [vmem:[%s327 + $0x24] sm:%s319] %v346
                  %v348 = vld [vmem:[%s326 + $0x50] sm:%s319]
                  %349 = vst [vmem:[%s327 + $0x28] sm:%s319] %v348
                  %v350 = vld [vmem:[%s326 + $0x58] sm:%s319]
                  %351 = vst [vmem:[%s327 + $0x2c] sm:%s319] %v350
                  %v352 = vld [vmem:[%s326 + $0x60] sm:%s319]
                  %353 = vst [vmem:[%s327 + $0x30] sm:%s319] %v352
                  %v354 = vld [vmem:[%s326 + $0x68] sm:%s319]
                  %355 = vst [vmem:[%s327 + $0x34] sm:%s319] %v354
                  %v356 = vld [vmem:[%s326 + $0x70] sm:%s319]
                  %357 = vst [vmem:[%s327 + $0x38] sm:%s319] %v356
                  %v358 = vld [vmem:[%s326 + $0x78] sm:%s319]
                  %359 = vst [vmem:[%s327 + $0x3c] sm:%s319] %v358
                $region67: #{tpu_custom_call.1} parent=54 // loop_footer
                  %s325 = sadd.s32 1, %s321
                $region68: #{tpu_custom_call.1} parent=54 // loop_footer_branch
                  %320 = sbr.rel target = $region64
                $region69: #{tpu_custom_call.1} parent=54 // loop_exit
                  _
              $region55: #{tpu_custom_call.1} parent=39 // pred_fallthru
                _
            $region40: #{tpu_custom_call.1} parent=35 // pred_fallthru
              _
            // Predicated region
            $region41: #{tpu_custom_call.1} parent=35 // pred_check
              _
            $region42: #{tpu_custom_call.1} parent=35 // pred_check_branch
              %265 = sbr.rel (0) target = $region44
            $region43: #{tpu_custom_call.1} parent=35 // pred_region
              %s267 = ssub.s32 16, 1
              loop: start=0, step=1, limit=1
              $region45: #{tpu_custom_call.1} parent=43 // loop_pre_header
                _
              $region46: #{tpu_custom_call.1} parent=43 // loop_header
                %s269 = sphi 0, %s273
                %p270 = scmp.ge.s32.totalorder %s269, 1
                %s274 = sphi %s259, %s259
                %s275 = sphi %s254, %s254
              $region47: #{tpu_custom_call.1} parent=43 // loop_header_branch
                %272 = sbr.rel (%p270) target = $region51
              $region48: #{tpu_custom_call.1} parent=43 // loop_body
                %v276 = vld [vmem:[%s274] sm:%s267]
                %277 = vst [vmem:[%s275] sm:%s267] %v276
                %v278 = vld [vmem:[%s274 + $0x8] sm:%s267]
                %279 = vst [vmem:[%s275 + $0x4] sm:%s267] %v278
                %v280 = vld [vmem:[%s274 + $0x10] sm:%s267]
                %281 = vst [vmem:[%s275 + $0x8] sm:%s267] %v280
                %v282 = vld [vmem:[%s274 + $0x18] sm:%s267]
                %283 = vst [vmem:[%s275 + $0xc] sm:%s267] %v282
                %v284 = vld [vmem:[%s274 + $0x20] sm:%s267]
                %285 = vst [vmem:[%s275 + $0x10] sm:%s267] %v284
                %v286 = vld [vmem:[%s274 + $0x28] sm:%s267]
                %287 = vst [vmem:[%s275 + $0x14] sm:%s267] %v286
                %v288 = vld [vmem:[%s274 + $0x30] sm:%s267]
                %289 = vst [vmem:[%s275 + $0x18] sm:%s267] %v288
                %v290 = vld [vmem:[%s274 + $0x38] sm:%s267]
                %291 = vst [vmem:[%s275 + $0x1c] sm:%s267] %v290
                %v292 = vld [vmem:[%s274 + $0x40] sm:%s267]
                %293 = vst [vmem:[%s275 + $0x20] sm:%s267] %v292
                %v294 = vld [vmem:[%s274 + $0x48] sm:%s267]
                %295 = vst [vmem:[%s275 + $0x24] sm:%s267] %v294
                %v296 = vld [vmem:[%s274 + $0x50] sm:%s267]
                %297 = vst [vmem:[%s275 + $0x28] sm:%s267] %v296
                %v298 = vld [vmem:[%s274 + $0x58] sm:%s267]
                %299 = vst [vmem:[%s275 + $0x2c] sm:%s267] %v298
                %v300 = vld [vmem:[%s274 + $0x60] sm:%s267]
                %301 = vst [vmem:[%s275 + $0x30] sm:%s267] %v300
                %v302 = vld [vmem:[%s274 + $0x68] sm:%s267]
                %303 = vst [vmem:[%s275 + $0x34] sm:%s267] %v302
                %v304 = vld [vmem:[%s274 + $0x70] sm:%s267]
                %305 = vst [vmem:[%s275 + $0x38] sm:%s267] %v304
                %v306 = vld [vmem:[%s274 + $0x78] sm:%s267]
                %307 = vst [vmem:[%s275 + $0x3c] sm:%s267] %v306
              $region49: #{tpu_custom_call.1} parent=43 // loop_footer
                %s273 = sadd.s32 1, %s269
              $region50: #{tpu_custom_call.1} parent=43 // loop_footer_branch
                %268 = sbr.rel target = $region46
              $region51: #{tpu_custom_call.1} parent=43 // loop_exit
                _
            $region44: #{tpu_custom_call.1} parent=35 // pred_fallthru
              _
          $region36: #{tpu_custom_call.1} parent=31 // pred_fallthru
            _
          %360 = vnop
        $region32: #{tpu_custom_call.1} parent=27 // pred_fallthru
          _
        // Predicated region
        $region70: #{tpu_custom_call.1} parent=27 // pred_check
          %p361 = pneg %p79
        $region71: #{tpu_custom_call.1} parent=27 // pred_check_branch
          %363 = sbr.rel (%p361) target = $region73
        $region72: #{tpu_custom_call.1} parent=27 // pred_region
          %s364 = sand.u32 %s69, 1
          %s365 = scalar_lea.sflag [#allocation5], %s364
          %s366 = sand.u32 %s69, 1
          %s367 = smul.addr %s366, 64
          %s368 = scalar_lea.vmem [#allocation4], %s367
          %s369 = smul.u32 16, %s27
          %s371 = ssub.s32 1024, 1024
          %372 = vsyncadd %s365, %s371
          %s373 = smul.addr %s369, 64
          %s374 = scalar_lea.hbm %s1, %s373
          %s375 = sshll.u32 %s368, 4
          %s376 = int_to_ptr.vmem [resolvable:$true] %s375
          %381 = dma.hbm_to_vmem [thread:$0]  %s374, 1024, %s376, %s365, 64, 64, 4
        $region73: #{tpu_custom_call.1} parent=27 // pred_fallthru
          _
        // Predicated region
        $region74: #{tpu_custom_call.1} parent=27 // pred_check
          %p382 = pneg %p168
        $region75: #{tpu_custom_call.1} parent=27 // pred_check_branch
          %384 = sbr.rel (%p382) target = $region77
        $region76: #{tpu_custom_call.1} parent=27 // pred_region
          %s385 = smul.u32 16, %s26
          %p386 = scmp.lt.s32.totalorder %s385, 31
          %s387 = scalar_select %p386, %s385, 31
          %s388 = smul.addr %s387, 8
          %s389 = scalar_lea.vmem %s5, %s388
          %s390 = smul.u32 16, %s26
        $region77: #{tpu_custom_call.1} parent=27 // pred_fallthru
          _
      $region28: #{tpu_custom_call.1} parent=5 // pred_fallthru
        _
      %p391 = scmp.le.s32.totalorder 1, %s19
      %p392 = scmp.lt.s32.totalorder %s19, 5
      %p393 = pnand %p391, %p392
      %p394 = pneg %p393
      // Predicated region
      $region78: #{tpu_custom_call.1} parent=5 // pred_check
        _
      $region79: #{tpu_custom_call.1} parent=5 // pred_check_branch
        %396 = sbr.rel (%p393) target = $region81
      $region80: #{tpu_custom_call.1} parent=5 // pred_region
        %s397 = ssub.s32 %s19, 1
        %s398 = sand.u32 %s46, 1
        %s399 = sand.u32 %s46, 1
        %s400 = smul.addr %s399, 64
        %s401 = scalar_lea.vmem [#allocation3], %s400
        // Predicated region
        $region82: #{tpu_custom_call.1} parent=80 // pred_check
          %p402 = pneg %p59
        $region83: #{tpu_custom_call.1} parent=80 // pred_check_branch
          %404 = sbr.rel (%p402) target = $region85
        $region84: #{tpu_custom_call.1} parent=80 // pred_region
          _
        $region85: #{tpu_custom_call.1} parent=80 // pred_fallthru
          _
        %s405 = sand.u32 %s72, 1
        %s406 = scalar_lea.sflag [#allocation5], %s405
        %s407 = sand.u32 %s72, 1
        %s408 = smul.addr %s407, 64
        %s409 = scalar_lea.vmem [#allocation4], %s408
        // Predicated region
        $region86: #{tpu_custom_call.1} parent=80 // pred_check
          %p410 = pneg %p85
        $region87: #{tpu_custom_call.1} parent=80 // pred_check_branch
          %412 = sbr.rel (%p410) target = $region89
        $region88: #{tpu_custom_call.1} parent=80 // pred_region
          %413 = dma.done %s406, 1024
        $region89: #{tpu_custom_call.1} parent=80 // pred_fallthru
          _
        // Predicated region
        $region90: #{tpu_custom_call.1} parent=80 // pred_check
          %p414 = pneg %p106
        $region91: #{tpu_custom_call.1} parent=80 // pred_check_branch
          %416 = sbr.rel (%p414) target = $region93
        $region92: #{tpu_custom_call.1} parent=80 // pred_region
          %417 = dma.done [#allocation8], 1024
        $region93: #{tpu_custom_call.1} parent=80 // pred_fallthru
          _
        // Predicated region
        $region94: #{tpu_custom_call.1} parent=80 // pred_check
          %p418 = pneg %p127
        $region95: #{tpu_custom_call.1} parent=80 // pred_check_branch
          %420 = sbr.rel (%p418) target = $region97
        $region96: #{tpu_custom_call.1} parent=80 // pred_region
          %421 = dma.done [#allocation8], 1024
        $region97: #{tpu_custom_call.1} parent=80 // pred_fallthru
          _
        %s422 = sand.u32 %s46, 1
        %s423 = sand.u32 %s46, 1
        %s424 = smul.addr %s423, 64
        %s425 = scalar_lea.vmem [#allocation3], %s424
        %p426 = pneg %p59
        %p427 = pneg %p56
        %s428 = sand.u32 %s72, 1
        %s429 = scalar_lea.sflag [#allocation5], %s428
        %s430 = sand.u32 %s72, 1
        %s431 = smul.addr %s430, 64
        %s432 = scalar_lea.vmem [#allocation4], %s431
        %p433 = pneg %p85
        %p434 = pneg %p82
        %p435 = pneg %p106
        %p436 = pneg %p103
        %p437 = pneg %p127
        %p438 = pneg %p124
        %p439 = pneg %p148
        %p440 = pneg %p145
        %s441 = smul.u32 16, %s28
        %p442 = scmp.lt.s32.totalorder %s441, 31
        %s443 = scalar_select %p442, %s441, 31
        %s444 = smul.addr %s443, 8
        %s445 = scalar_lea.vmem %s5, %s444
        %p446 = pneg %p174
        %p447 = pneg %p171
        %p448 = pneg %p200
        %p449 = pneg %p197
        %s450 = sand.u32 %s187, 1
        %s451 = scalar_lea.sflag [#allocation6], %s450
        %s452 = sand.u32 %s187, 1
        %s453 = smul.addr %s452, 64
        %s454 = scalar_lea.vmem [#allocation10], %s453
        %s455 = smul.u32 16, %s28
        %s456 = smul.u32 16, %s29
        %s457 = smul.u32 16, %s28
        %p458 = scmp.lt.s32.totalorder %s457, 31
        %s459 = scalar_select %p458, %s457, 31
        %s460 = smul.addr %s459, 8
        %s461 = scalar_lea.vmem %s5, %s460
        %s462 = smul.u32 16, %s28
        %s463 = smul.u32 16, %s28
        %p465 = scmp.eq.s32.totalorder %s29, 0
        // Predicated region
        $region98: #{tpu_custom_call.1} parent=80 // pred_check
          %p466 = pneg %p465
        $region99: #{tpu_custom_call.1} parent=80 // pred_check_branch
          %468 = sbr.rel (%p466) target = $region101
        $region100: #{tpu_custom_call.1} parent=80 // pred_region
          %469 = vst [vmem:[#allocation2] sm:$0xff] 0.0
          %470 = vst [vmem:[#allocation2 + $0x8] sm:$0xff] 0.0
          %471 = vst [vmem:[#allocation2 + $0x10] sm:$0xff] 0.0
          %472 = vst [vmem:[#allocation2 + $0x18] sm:$0xff] 0.0
          %473 = vst [vmem:[#allocation2 + $0x20] sm:$0xff] 0.0
          %474 = vst [vmem:[#allocation2 + $0x28] sm:$0xff] 0.0
          %475 = vst [vmem:[#allocation2 + $0x30] sm:$0xff] 0.0
          %476 = vst [vmem:[#allocation2 + $0x38] sm:$0xff] 0.0
          %477 = vst [vmem:[#allocation2 + $0x40] sm:$0xff] 0.0
          %478 = vst [vmem:[#allocation2 + $0x48] sm:$0xff] 0.0
          %479 = vst [vmem:[#allocation2 + $0x50] sm:$0xff] 0.0
          %480 = vst [vmem:[#allocation2 + $0x58] sm:$0xff] 0.0
          %481 = vst [vmem:[#allocation2 + $0x60] sm:$0xff] 0.0
          %482 = vst [vmem:[#allocation2 + $0x68] sm:$0xff] 0.0
          %483 = vst [vmem:[#allocation2 + $0x70] sm:$0xff] 0.0
          %484 = vst [vmem:[#allocation2 + $0x78] sm:$0xff] 0.0
        $region101: #{tpu_custom_call.1} parent=80 // pred_fallthru
          _
        %v485 = vld [vmem:[#allocation2] sm:$0xff]
        %v486 = vld [vmem:[#allocation2 + $0x8] sm:$0xff]
        %v487 = vld [vmem:[#allocation2 + $0x10] sm:$0xff]
        %v488 = vld [vmem:[#allocation2 + $0x18] sm:$0xff]
        %v489 = vld [vmem:[#allocation2 + $0x20] sm:$0xff]
        %v490 = vld [vmem:[#allocation2 + $0x28] sm:$0xff]
        %v491 = vld [vmem:[#allocation2 + $0x30] sm:$0xff]
        %v492 = vld [vmem:[#allocation2 + $0x38] sm:$0xff]
        %v493 = vld [vmem:[#allocation2 + $0x40] sm:$0xff]
        %v494 = vld [vmem:[#allocation2 + $0x48] sm:$0xff]
        %v495 = vld [vmem:[#allocation2 + $0x50] sm:$0xff]
        %v496 = vld [vmem:[#allocation2 + $0x58] sm:$0xff]
        %v497 = vld [vmem:[#allocation2 + $0x60] sm:$0xff]
        %v498 = vld [vmem:[#allocation2 + $0x68] sm:$0xff]
        %v499 = vld [vmem:[#allocation2 + $0x70] sm:$0xff]
        %v500 = vld [vmem:[#allocation2 + $0x78] sm:$0xff]
        %v501 = vld [vmem:[%s401] sm:$0xf]
        %v502 = vld [vmem:[%s401 + $0x4] sm:$0xf]
        %v503 = vld [vmem:[%s401 + $0x8] sm:$0xf]
        %v504 = vld [vmem:[%s401 + $0xc] sm:$0xf]
        %v505 = vld [vmem:[%s401 + $0x10] sm:$0xf]
        %v506 = vld [vmem:[%s401 + $0x14] sm:$0xf]
        %v507 = vld [vmem:[%s401 + $0x18] sm:$0xf]
        %v508 = vld [vmem:[%s401 + $0x1c] sm:$0xf]
        %v509 = vld [vmem:[%s401 + $0x20] sm:$0xf]
        %v510 = vld [vmem:[%s401 + $0x24] sm:$0xf]
        %v511 = vld [vmem:[%s401 + $0x28] sm:$0xf]
        %v512 = vld [vmem:[%s401 + $0x2c] sm:$0xf]
        %v513 = vld [vmem:[%s401 + $0x30] sm:$0xf]
        %v514 = vld [vmem:[%s401 + $0x34] sm:$0xf]
        %v515 = vld [vmem:[%s401 + $0x38] sm:$0xf]
        %v516 = vld [vmem:[%s401 + $0x3c] sm:$0xf]
        %v517 = vld [vmem:[%s409] sm:$0xf]
        %v518 = vld [vmem:[%s409 + $0x4] sm:$0xf]
        %v519 = vld [vmem:[%s409 + $0x8] sm:$0xf]
        %v520 = vld [vmem:[%s409 + $0xc] sm:$0xf]
        %v521 = vld [vmem:[%s409 + $0x10] sm:$0xf]
        %v522 = vld [vmem:[%s409 + $0x14] sm:$0xf]
        %v523 = vld [vmem:[%s409 + $0x18] sm:$0xf]
        %v524 = vld [vmem:[%s409 + $0x1c] sm:$0xf]
        %v525 = vld [vmem:[%s409 + $0x20] sm:$0xf]
        %v526 = vld [vmem:[%s409 + $0x24] sm:$0xf]
        %v527 = vld [vmem:[%s409 + $0x28] sm:$0xf]
        %v528 = vld [vmem:[%s409 + $0x2c] sm:$0xf]
        %v529 = vld [vmem:[%s409 + $0x30] sm:$0xf]
        %v530 = vld [vmem:[%s409 + $0x34] sm:$0xf]
        %v531 = vld [vmem:[%s409 + $0x38] sm:$0xf]
        %v532 = vld [vmem:[%s409 + $0x3c] sm:$0xf]
        %v549 = vunpack.c.l.b16 %v501
        %v550 = vunpack.c.l.b16 %v502
        %v551 = vunpack.c.l.b16 %v503
        %v552 = vunpack.c.l.b16 %v504
        %v553 = vunpack.c.l.b16 %v505
        %v554 = vunpack.c.l.b16 %v506
        %v555 = vunpack.c.l.b16 %v507
        %v556 = vunpack.c.l.b16 %v508
        %v557 = vunpack.c.l.b16 %v509
        %v558 = vunpack.c.l.b16 %v510
        %v559 = vunpack.c.l.b16 %v511
        %v560 = vunpack.c.l.b16 %v512
        %v561 = vunpack.c.l.b16 %v513
        %v562 = vunpack.c.l.b16 %v514
        %v563 = vunpack.c.l.b16 %v515
        %v564 = vunpack.c.l.b16 %v516
        %v565 = vpack.c.b16 %v550, %v549
        %v566 = vpack.c.b16 %v552, %v551
        %v567 = vpack.c.b16 %v554, %v553
        %v568 = vpack.c.b16 %v556, %v555
        %v569 = vpack.c.b16 %v558, %v557
        %v570 = vpack.c.b16 %v560, %v559
        %v571 = vpack.c.b16 %v562, %v561
        %v572 = vpack.c.b16 %v564, %v563
        %v597 = vunpack.c.l.b16 %v517
        %v598 = vunpack.c.l.b16 %v518
        %v599 = vunpack.c.l.b16 %v519
        %v600 = vunpack.c.l.b16 %v520
        %v601 = vunpack.c.l.b16 %v521
        %v602 = vunpack.c.l.b16 %v522
        %v603 = vunpack.c.l.b16 %v523
        %v604 = vunpack.c.l.b16 %v524
        %v605 = vunpack.c.l.b16 %v525
        %v606 = vunpack.c.l.b16 %v526
        %v607 = vunpack.c.l.b16 %v527
        %v608 = vunpack.c.l.b16 %v528
        %v609 = vunpack.c.l.b16 %v529
        %v610 = vunpack.c.l.b16 %v530
        %v611 = vunpack.c.l.b16 %v531
        %v612 = vunpack.c.l.b16 %v532
        %v613 = vpack.c.b16 %v598, %v597
        %v614 = vpack.c.b16 %v600, %v599
        %v615 = vpack.c.b16 %v602, %v601
        %v616 = vpack.c.b16 %v604, %v603
        %v617 = vpack.c.b16 %v606, %v605
        %v618 = vpack.c.b16 %v608, %v607
        %v619 = vpack.c.b16 %v610, %v609
        %v620 = vpack.c.b16 %v612, %v611
        %629 = vmatprep.subr.bf16.mxu0 0
        %630 = vmatpush1.bf16.msra.mxu0 %v620
        %631 = vmatprep.subr.bf16.mxu0 0
        %632 = vmatpush1.bf16.msra.mxu0 %v619
        %633 = vmatprep.subr.bf16.mxu0 0
        %634 = vmatpush1.bf16.msra.mxu0 %v618
        %635 = vmatprep.subr.bf16.mxu0 0
        %636 = vmatpush1.bf16.msra.mxu0 %v617
        %637 = vmatprep.subr.bf16.mxu0 0
        %638 = vmatpush1.bf16.msra.mxu0 %v616
        %639 = vmatprep.subr.bf16.mxu0 0
        %640 = vmatpush1.bf16.msra.mxu0 %v615
        %641 = vmatprep.subr.bf16.mxu0 0
        %642 = vmatpush1.bf16.msra.mxu0 %v614
        %643 = vmatprep.subr.bf16.mxu0 0
        %644 = vmatpush1.bf16.msra.mxu0 %v613
        %645 = vmatprep.subr.bf16.mxu0 0
        %646 = vmatpush2.bf16.msra.mxu0 0
        %647 = vmatprep.subr.bf16.mxu0 0
        %648 = vmatpush2.bf16.msra.mxu0 0
        %649 = vmatprep.subr.bf16.mxu0 0
        %650 = vmatpush2.bf16.msra.mxu0 0
        %651 = vmatprep.subr.bf16.mxu0 0
        %652 = vmatpush2.bf16.msra.mxu0 0
        %653 = vmatprep.subr.bf16.mxu0 0
        %654 = vmatpush2.bf16.msra.mxu0 0
        %655 = vmatprep.subr.bf16.mxu0 0
        %656 = vmatpush2.bf16.msra.mxu0 0
        %657 = vmatprep.subr.bf16.mxu0 0
        %658 = vmatpush2.bf16.msra.mxu0 0
        %659 = vmatprep.subr.bf16.mxu0 0
        %660 = vmatpush2.bf16.msra.mxu0 0
        %661 = vmatprep.mubr.bf16.mxu0 0
        %662 = vmatmul.mubr.bf16.gmra.mxu0 %v565
        %v663 = vpop.f32.mrf.mxu0
        %v664 = vadd.f32 0.0, %v663
        %v665 = vpop.f32.mrf.mxu0
        %v666 = vpop.f32.mrf.mxu0
        %v667 = vadd.f32 0.0, %v666
        %v668 = vpop.f32.mrf.mxu0
        %669 = vmatprep.mubr.bf16.mxu0 0
        %670 = vmatmul.mubr.bf16.gmra.mxu0 %v566
        %v671 = vpop.f32.mrf.mxu0
        %v672 = vadd.f32 0.0, %v671
        %v673 = vpop.f32.mrf.mxu0
        %v674 = vpop.f32.mrf.mxu0
        %v675 = vadd.f32 0.0, %v674
        %v676 = vpop.f32.mrf.mxu0
        %677 = vmatprep.mubr.bf16.mxu0 0
        %678 = vmatmul.mubr.bf16.gmra.mxu0 %v567
        %v679 = vpop.f32.mrf.mxu0
        %v680 = vadd.f32 0.0, %v679
        %v681 = vpop.f32.mrf.mxu0
        %v682 = vpop.f32.mrf.mxu0
        %v683 = vadd.f32 0.0, %v682
        %v684 = vpop.f32.mrf.mxu0
        %685 = vmatprep.mubr.bf16.mxu0 0
        %686 = vmatmul.mubr.bf16.gmra.mxu0 %v568
        %v687 = vpop.f32.mrf.mxu0
        %v688 = vadd.f32 0.0, %v687
        %v689 = vpop.f32.mrf.mxu0
        %v690 = vpop.f32.mrf.mxu0
        %v691 = vadd.f32 0.0, %v690
        %v692 = vpop.f32.mrf.mxu0
        %693 = vmatprep.mubr.bf16.mxu0 0
        %694 = vmatmul.mubr.bf16.gmra.mxu0 %v569
        %v695 = vpop.f32.mrf.mxu0
        %v696 = vadd.f32 0.0, %v695
        %v697 = vpop.f32.mrf.mxu0
        %v698 = vpop.f32.mrf.mxu0
        %v699 = vadd.f32 0.0, %v698
        %v700 = vpop.f32.mrf.mxu0
        %701 = vmatprep.mubr.bf16.mxu0 0
        %702 = vmatmul.mubr.bf16.gmra.mxu0 %v570
        %v703 = vpop.f32.mrf.mxu0
        %v704 = vadd.f32 0.0, %v703
        %v705 = vpop.f32.mrf.mxu0
        %v706 = vpop.f32.mrf.mxu0
        %v707 = vadd.f32 0.0, %v706
        %v708 = vpop.f32.mrf.mxu0
        %709 = vmatprep.mubr.bf16.mxu0 0
        %710 = vmatmul.mubr.bf16.gmra.mxu0 %v571
        %v711 = vpop.f32.mrf.mxu0
        %v712 = vadd.f32 0.0, %v711
        %v713 = vpop.f32.mrf.mxu0
        %v714 = vpop.f32.mrf.mxu0
        %v715 = vadd.f32 0.0, %v714
        %v716 = vpop.f32.mrf.mxu0
        %717 = vmatprep.mubr.bf16.mxu0 0
        %718 = vmatmul.mubr.bf16.gmra.mxu0 %v572
        %v719 = vpop.f32.mrf.mxu0
        %v720 = vadd.f32 0.0, %v719
        %v721 = vpop.f32.mrf.mxu0
        %v722 = vpop.f32.mrf.mxu0
        %v723 = vadd.f32 0.0, %v722
        %v724 = vpop.f32.mrf.mxu0
        %725 = vdwg.mxu0
        %v726 = vadd.f32 %v485, %v664
        %v727 = vadd.f32 %v486, %v667
        %v728 = vadd.f32 %v487, %v672
        %v729 = vadd.f32 %v488, %v675
        %v730 = vadd.f32 %v489, %v680
        %v731 = vadd.f32 %v490, %v683
        %v732 = vadd.f32 %v491, %v688
        %v733 = vadd.f32 %v492, %v691
        %v734 = vadd.f32 %v493, %v696
        %v735 = vadd.f32 %v494, %v699
        %v736 = vadd.f32 %v495, %v704
        %v737 = vadd.f32 %v496, %v707
        %v738 = vadd.f32 %v497, %v712
        %v739 = vadd.f32 %v498, %v715
        %v740 = vadd.f32 %v499, %v720
        %v741 = vadd.f32 %v500, %v723
        %742 = vst [vmem:[#allocation2] sm:$0xff] %v726
        %743 = vst [vmem:[#allocation2 + $0x8] sm:$0xff] %v727
        %744 = vst [vmem:[#allocation2 + $0x10] sm:$0xff] %v728
        %745 = vst [vmem:[#allocation2 + $0x18] sm:$0xff] %v729
        %746 = vst [vmem:[#allocation2 + $0x20] sm:$0xff] %v730
        %747 = vst [vmem:[#allocation2 + $0x28] sm:$0xff] %v731
        %748 = vst [vmem:[#allocation2 + $0x30] sm:$0xff] %v732
        %749 = vst [vmem:[#allocation2 + $0x38] sm:$0xff] %v733
        %750 = vst [vmem:[#allocation2 + $0x40] sm:$0xff] %v734
        %751 = vst [vmem:[#allocation2 + $0x48] sm:$0xff] %v735
        %752 = vst [vmem:[#allocation2 + $0x50] sm:$0xff] %v736
        %753 = vst [vmem:[#allocation2 + $0x58] sm:$0xff] %v737
        %754 = vst [vmem:[#allocation2 + $0x60] sm:$0xff] %v738
        %755 = vst [vmem:[#allocation2 + $0x68] sm:$0xff] %v739
        %756 = vst [vmem:[#allocation2 + $0x70] sm:$0xff] %v740
        %757 = vst [vmem:[#allocation2 + $0x78] sm:$0xff] %v741
        %p758 = scmp.eq.s32.totalorder %s29, 1
        // Predicated region
        $region102: #{tpu_custom_call.1} parent=80 // pred_check
          %p759 = pneg %p758
        $region103: #{tpu_custom_call.1} parent=80 // pred_check_branch
          %761 = sbr.rel (%p759) target = $region105
        $region104: #{tpu_custom_call.1} parent=80 // pred_region
          %v762 = vld [vmem:[#allocation2] sm:$0xff]
          %v763 = vld [vmem:[#allocation2 + $0x8] sm:$0xff]
          %v764 = vld [vmem:[#allocation2 + $0x10] sm:$0xff]
          %v765 = vld [vmem:[#allocation2 + $0x18] sm:$0xff]
          %v766 = vld [vmem:[#allocation2 + $0x20] sm:$0xff]
          %v767 = vld [vmem:[#allocation2 + $0x28] sm:$0xff]
          %v768 = vld [vmem:[#allocation2 + $0x30] sm:$0xff]
          %v769 = vld [vmem:[#allocation2 + $0x38] sm:$0xff]
          %v770 = vld [vmem:[#allocation2 + $0x40] sm:$0xff]
          %v771 = vld [vmem:[#allocation2 + $0x48] sm:$0xff]
          %v772 = vld [vmem:[#allocation2 + $0x50] sm:$0xff]
          %v773 = vld [vmem:[#allocation2 + $0x58] sm:$0xff]
          %v774 = vld [vmem:[#allocation2 + $0x60] sm:$0xff]
          %v775 = vld [vmem:[#allocation2 + $0x68] sm:$0xff]
          %v776 = vld [vmem:[#allocation2 + $0x70] sm:$0xff]
          %v777 = vld [vmem:[#allocation2 + $0x78] sm:$0xff]
          %v778 = vpack.c.bf16 %v763, %v762
          %v779 = vpack.c.bf16 %v765, %v764
          %v780 = vpack.c.bf16 %v767, %v766
          %v781 = vpack.c.bf16 %v769, %v768
          %v782 = vpack.c.bf16 %v771, %v770
          %v783 = vpack.c.bf16 %v773, %v772
          %v784 = vpack.c.bf16 %v775, %v774
          %v785 = vpack.c.bf16 %v777, %v776
          %v786 = vld [vmem:[#allocation7] sm:$0xf]
          %v787 = vld [vmem:[#allocation7 + $0x4] sm:$0xf]
          %v788 = vld [vmem:[#allocation7 + $0x8] sm:$0xf]
          %v789 = vld [vmem:[#allocation7 + $0xc] sm:$0xf]
          %v790 = vld [vmem:[#allocation7 + $0x10] sm:$0xf]
          %v791 = vld [vmem:[#allocation7 + $0x14] sm:$0xf]
          %v792 = vld [vmem:[#allocation7 + $0x18] sm:$0xf]
          %v793 = vld [vmem:[#allocation7 + $0x1c] sm:$0xf]
          %v794 = vld [vmem:[#allocation7 + $0x20] sm:$0xf]
          %v795 = vld [vmem:[#allocation7 + $0x24] sm:$0xf]
          %v796 = vld [vmem:[#allocation7 + $0x28] sm:$0xf]
          %v797 = vld [vmem:[#allocation7 + $0x2c] sm:$0xf]
          %v798 = vld [vmem:[#allocation7 + $0x30] sm:$0xf]
          %v799 = vld [vmem:[#allocation7 + $0x34] sm:$0xf]
          %v800 = vld [vmem:[#allocation7 + $0x38] sm:$0xf]
          %v801 = vld [vmem:[#allocation7 + $0x3c] sm:$0xf]
          %v818 = vunpack.c.l.b16 %v786
          %v819 = vunpack.c.l.b16 %v787
          %v820 = vunpack.c.l.b16 %v788
          %v821 = vunpack.c.l.b16 %v789
          %v822 = vunpack.c.l.b16 %v790
          %v823 = vunpack.c.l.b16 %v791
          %v824 = vunpack.c.l.b16 %v792
          %v825 = vunpack.c.l.b16 %v793
          %v826 = vunpack.c.l.b16 %v794
          %v827 = vunpack.c.l.b16 %v795
          %v828 = vunpack.c.l.b16 %v796
          %v829 = vunpack.c.l.b16 %v797
          %v830 = vunpack.c.l.b16 %v798
          %v831 = vunpack.c.l.b16 %v799
          %v832 = vunpack.c.l.b16 %v800
          %v833 = vunpack.c.l.b16 %v801
          %v834 = vpack.c.b16 %v819, %v818
          %v835 = vpack.c.b16 %v821, %v820
          %v836 = vpack.c.b16 %v823, %v822
          %v837 = vpack.c.b16 %v825, %v824
          %v838 = vpack.c.b16 %v827, %v826
          %v839 = vpack.c.b16 %v829, %v828
          %v840 = vpack.c.b16 %v831, %v830
          %v841 = vpack.c.b16 %v833, %v832
          %850 = vmatprep.subr.bf16.mxu0 0
          %851 = vmatpush1.bf16.msra.mxu0 %v841
          %852 = vmatprep.subr.bf16.mxu0 0
          %853 = vmatpush1.bf16.msra.mxu0 %v840
          %854 = vmatprep.subr.bf16.mxu0 0
          %855 = vmatpush1.bf16.msra.mxu0 %v839
          %856 = vmatprep.subr.bf16.mxu0 0
          %857 = vmatpush1.bf16.msra.mxu0 %v838
          %858 = vmatprep.subr.bf16.mxu0 0
          %859 = vmatpush1.bf16.msra.mxu0 %v837
          %860 = vmatprep.subr.bf16.mxu0 0
          %861 = vmatpush1.bf16.msra.mxu0 %v836
          %862 = vmatprep.subr.bf16.mxu0 0
          %863 = vmatpush1.bf16.msra.mxu0 %v835
          %864 = vmatprep.subr.bf16.mxu0 0
          %865 = vmatpush1.bf16.msra.mxu0 %v834
          %866 = vmatprep.subr.bf16.mxu0 0
          %867 = vmatpush2.bf16.msra.mxu0 0
          %868 = vmatprep.subr.bf16.mxu0 0
          %869 = vmatpush2.bf16.msra.mxu0 0
          %870 = vmatprep.subr.bf16.mxu0 0
          %871 = vmatpush2.bf16.msra.mxu0 0
          %872 = vmatprep.subr.bf16.mxu0 0
          %873 = vmatpush2.bf16.msra.mxu0 0
          %874 = vmatprep.subr.bf16.mxu0 0
          %875 = vmatpush2.bf16.msra.mxu0 0
          %876 = vmatprep.subr.bf16.mxu0 0
          %877 = vmatpush2.bf16.msra.mxu0 0
          %878 = vmatprep.subr.bf16.mxu0 0
          %879 = vmatpush2.bf16.msra.mxu0 0
          %880 = vmatprep.subr.bf16.mxu0 0
          %881 = vmatpush2.bf16.msra.mxu0 0
          %882 = vmatprep.mubr.bf16.mxu0 0
          %883 = vmatmul.mubr.bf16.gmra.mxu0 %v778
          %v884 = vpop.f32.mrf.mxu0
          %v885 = vadd.f32 0.0, %v884
          %v886 = vpop.f32.mrf.mxu0
          %v887 = vpop.f32.mrf.mxu0
          %v888 = vadd.f32 0.0, %v887
          %v889 = vpop.f32.mrf.mxu0
          %890 = vmatprep.mubr.bf16.mxu0 0
          %891 = vmatmul.mubr.bf16.gmra.mxu0 %v779
          %v892 = vpop.f32.mrf.mxu0
          %v893 = vadd.f32 0.0, %v892
          %v894 = vpop.f32.mrf.mxu0
          %v895 = vpop.f32.mrf.mxu0
          %v896 = vadd.f32 0.0, %v895
          %v897 = vpop.f32.mrf.mxu0
          %898 = vmatprep.mubr.bf16.mxu0 0
          %899 = vmatmul.mubr.bf16.gmra.mxu0 %v780
          %v900 = vpop.f32.mrf.mxu0
          %v901 = vadd.f32 0.0, %v900
          %v902 = vpop.f32.mrf.mxu0
          %v903 = vpop.f32.mrf.mxu0
          %v904 = vadd.f32 0.0, %v903
          %v905 = vpop.f32.mrf.mxu0
          %906 = vmatprep.mubr.bf16.mxu0 0
          %907 = vmatmul.mubr.bf16.gmra.mxu0 %v781
          %v908 = vpop.f32.mrf.mxu0
          %v909 = vadd.f32 0.0, %v908
          %v910 = vpop.f32.mrf.mxu0
          %v911 = vpop.f32.mrf.mxu0
          %v912 = vadd.f32 0.0, %v911
          %v913 = vpop.f32.mrf.mxu0
          %914 = vmatprep.mubr.bf16.mxu0 0
          %915 = vmatmul.mubr.bf16.gmra.mxu0 %v782
          %v916 = vpop.f32.mrf.mxu0
          %v917 = vadd.f32 0.0, %v916
          %v918 = vpop.f32.mrf.mxu0
          %v919 = vpop.f32.mrf.mxu0
          %v920 = vadd.f32 0.0, %v919
          %v921 = vpop.f32.mrf.mxu0
          %922 = vmatprep.mubr.bf16.mxu0 0
          %923 = vmatmul.mubr.bf16.gmra.mxu0 %v783
          %v924 = vpop.f32.mrf.mxu0
          %v925 = vadd.f32 0.0, %v924
          %v926 = vpop.f32.mrf.mxu0
          %v927 = vpop.f32.mrf.mxu0
          %v928 = vadd.f32 0.0, %v927
          %v929 = vpop.f32.mrf.mxu0
          %930 = vmatprep.mubr.bf16.mxu0 0
          %931 = vmatmul.mubr.bf16.gmra.mxu0 %v784
          %v932 = vpop.f32.mrf.mxu0
          %v933 = vadd.f32 0.0, %v932
          %v934 = vpop.f32.mrf.mxu0
          %v935 = vpop.f32.mrf.mxu0
          %v936 = vadd.f32 0.0, %v935
          %v937 = vpop.f32.mrf.mxu0
          %938 = vmatprep.mubr.bf16.mxu0 0
          %939 = vmatmul.mubr.bf16.gmra.mxu0 %v785
          %v940 = vpop.f32.mrf.mxu0
          %v941 = vadd.f32 0.0, %v940
          %v942 = vpop.f32.mrf.mxu0
          %v943 = vpop.f32.mrf.mxu0
          %v944 = vadd.f32 0.0, %v943
          %v945 = vpop.f32.mrf.mxu0
          %946 = vdwg.mxu0
          %v947 = vld [vmem:[%s461] sm:$0xff]
          %v948 = vld [vmem:[%s461 + $0x8] sm:$0xff]
          %v949 = vld [vmem:[%s461 + $0x10] sm:$0xff]
          %v950 = vld [vmem:[%s461 + $0x18] sm:$0xff]
          %v951 = vld [vmem:[%s461 + $0x20] sm:$0xff]
          %v952 = vld [vmem:[%s461 + $0x28] sm:$0xff]
          %v953 = vld [vmem:[%s461 + $0x30] sm:$0xff]
          %v954 = vld [vmem:[%s461 + $0x38] sm:$0xff]
          %v955 = vld [vmem:[%s461 + $0x40] sm:$0xff]
          %v956 = vld [vmem:[%s461 + $0x48] sm:$0xff]
          %v957 = vld [vmem:[%s461 + $0x50] sm:$0xff]
          %v958 = vld [vmem:[%s461 + $0x58] sm:$0xff]
          %v959 = vld [vmem:[%s461 + $0x60] sm:$0xff]
          %v960 = vld [vmem:[%s461 + $0x68] sm:$0xff]
          %v961 = vld [vmem:[%s461 + $0x70] sm:$0xff]
          %v962 = vld [vmem:[%s461 + $0x78] sm:$0xff]
          %v963 = vld [vmem:[%s4] sm:$0x1]
          %v965 = vlaneseq
          %v966 = vshrl.u32 %v965, 7
          %v967 = vsub.s32 0, %v966
          %v968 = vrot.slane %v963, %v967
          %v970 = vsub.f32 %v968, %v885
          %v971 = vsub.f32 %v968, %v888
          %v972 = vsub.f32 %v968, %v893
          %v973 = vsub.f32 %v968, %v896
          %v974 = vsub.f32 %v968, %v901
          %v975 = vsub.f32 %v968, %v904
          %v976 = vsub.f32 %v968, %v909
          %v977 = vsub.f32 %v968, %v912
          %v978 = vsub.f32 %v968, %v917
          %v979 = vsub.f32 %v968, %v920
          %v980 = vsub.f32 %v968, %v925
          %v981 = vsub.f32 %v968, %v928
          %v982 = vsub.f32 %v968, %v933
          %v983 = vsub.f32 %v968, %v936
          %v984 = vsub.f32 %v968, %v941
          %v985 = vsub.f32 %v968, %v944
          %987 = vset.pattern.permute.xlu0 0
          %988 = vperm.xlu0 %987, %v947
          %v989 = vpop.permute.xlu0 %988
          %992 = vset.pattern.permute.xlu0 0
          %993 = vperm.xlu0 %992, %v948
          %v994 = vpop.permute.xlu0 %993
          %997 = vset.pattern.permute.xlu0 0
          %998 = vperm.xlu0 %997, %v949
          %v999 = vpop.permute.xlu0 %998
          %1002 = vset.pattern.permute.xlu0 0
          %1003 = vperm.xlu0 %1002, %v950
          %v1004 = vpop.permute.xlu0 %1003
          %1007 = vset.pattern.permute.xlu0 0
          %1008 = vperm.xlu0 %1007, %v951
          %v1009 = vpop.permute.xlu0 %1008
          %1012 = vset.pattern.permute.xlu0 0
          %1013 = vperm.xlu0 %1012, %v952
          %v1014 = vpop.permute.xlu0 %1013
          %1017 = vset.pattern.permute.xlu0 0
          %1018 = vperm.xlu0 %1017, %v953
          %v1019 = vpop.permute.xlu0 %1018
          %1022 = vset.pattern.permute.xlu0 0
          %1023 = vperm.xlu0 %1022, %v954
          %v1024 = vpop.permute.xlu0 %1023
          %1027 = vset.pattern.permute.xlu0 0
          %1028 = vperm.xlu0 %1027, %v955
          %v1029 = vpop.permute.xlu0 %1028
          %1032 = vset.pattern.permute.xlu0 0
          %1033 = vperm.xlu0 %1032, %v956
          %v1034 = vpop.permute.xlu0 %1033
          %1037 = vset.pattern.permute.xlu0 0
          %1038 = vperm.xlu0 %1037, %v957
          %v1039 = vpop.permute.xlu0 %1038
          %1042 = vset.pattern.permute.xlu0 0
          %1043 = vperm.xlu0 %1042, %v958
          %v1044 = vpop.permute.xlu0 %1043
          %1047 = vset.pattern.permute.xlu0 0
          %1048 = vperm.xlu0 %1047, %v959
          %v1049 = vpop.permute.xlu0 %1048
          %1052 = vset.pattern.permute.xlu0 0
          %1053 = vperm.xlu0 %1052, %v960
          %v1054 = vpop.permute.xlu0 %1053
          %1057 = vset.pattern.permute.xlu0 0
          %1058 = vperm.xlu0 %1057, %v961
          %v1059 = vpop.permute.xlu0 %1058
          %1062 = vset.pattern.permute.xlu0 0
          %1063 = vperm.xlu0 %1062, %v962
          %v1064 = vpop.permute.xlu0 %1063
          %v1066 = vmul.f32 %v989, %v970
          %v1067 = vmul.f32 %v994, %v971
          %v1068 = vmul.f32 %v999, %v972
          %v1069 = vmul.f32 %v1004, %v973
          %v1070 = vmul.f32 %v1009, %v974
          %v1071 = vmul.f32 %v1014, %v975
          %v1072 = vmul.f32 %v1019, %v976
          %v1073 = vmul.f32 %v1024, %v977
          %v1074 = vmul.f32 %v1029, %v978
          %v1075 = vmul.f32 %v1034, %v979
          %v1076 = vmul.f32 %v1039, %v980
          %v1077 = vmul.f32 %v1044, %v981
          %v1078 = vmul.f32 %v1049, %v982
          %v1079 = vmul.f32 %v1054, %v983
          %v1080 = vmul.f32 %v1059, %v984
          %v1081 = vmul.f32 %v1064, %v985
          %v1082 = vadd.f32 %v885, %v1066
          %v1083 = vadd.f32 %v888, %v1067
          %v1084 = vadd.f32 %v893, %v1068
          %v1085 = vadd.f32 %v896, %v1069
          %v1086 = vadd.f32 %v901, %v1070
          %v1087 = vadd.f32 %v904, %v1071
          %v1088 = vadd.f32 %v909, %v1072
          %v1089 = vadd.f32 %v912, %v1073
          %v1090 = vadd.f32 %v917, %v1074
          %v1091 = vadd.f32 %v920, %v1075
          %v1092 = vadd.f32 %v925, %v1076
          %v1093 = vadd.f32 %v928, %v1077
          %v1094 = vadd.f32 %v933, %v1078
          %v1095 = vadd.f32 %v936, %v1079
          %v1096 = vadd.f32 %v941, %v1080
          %v1097 = vadd.f32 %v944, %v1081
          %v1098 = vpack.c.bf16 %v1083, %v1082
          %v1099 = vpack.c.bf16 %v1085, %v1084
          %v1100 = vpack.c.bf16 %v1087, %v1086
          %v1101 = vpack.c.bf16 %v1089, %v1088
          %v1102 = vpack.c.bf16 %v1091, %v1090
          %v1103 = vpack.c.bf16 %v1093, %v1092
          %v1104 = vpack.c.bf16 %v1095, %v1094
          %v1105 = vpack.c.bf16 %v1097, %v1096
          %v1106 = vld [vmem:[#allocation9] sm:$0xf]
          %v1107 = vld [vmem:[#allocation9 + $0x4] sm:$0xf]
          %v1108 = vld [vmem:[#allocation9 + $0x8] sm:$0xf]
          %v1109 = vld [vmem:[#allocation9 + $0xc] sm:$0xf]
          %v1110 = vld [vmem:[#allocation9 + $0x10] sm:$0xf]
          %v1111 = vld [vmem:[#allocation9 + $0x14] sm:$0xf]
          %v1112 = vld [vmem:[#allocation9 + $0x18] sm:$0xf]
          %v1113 = vld [vmem:[#allocation9 + $0x1c] sm:$0xf]
          %v1114 = vld [vmem:[#allocation9 + $0x20] sm:$0xf]
          %v1115 = vld [vmem:[#allocation9 + $0x24] sm:$0xf]
          %v1116 = vld [vmem:[#allocation9 + $0x28] sm:$0xf]
          %v1117 = vld [vmem:[#allocation9 + $0x2c] sm:$0xf]
          %v1118 = vld [vmem:[#allocation9 + $0x30] sm:$0xf]
          %v1119 = vld [vmem:[#allocation9 + $0x34] sm:$0xf]
          %v1120 = vld [vmem:[#allocation9 + $0x38] sm:$0xf]
          %v1121 = vld [vmem:[#allocation9 + $0x3c] sm:$0xf]
          %v1138 = vunpack.c.l.b16 %v1106
          %v1139 = vunpack.c.l.b16 %v1107
          %v1140 = vunpack.c.l.b16 %v1108
          %v1141 = vunpack.c.l.b16 %v1109
          %v1142 = vunpack.c.l.b16 %v1110
          %v1143 = vunpack.c.l.b16 %v1111
          %v1144 = vunpack.c.l.b16 %v1112
          %v1145 = vunpack.c.l.b16 %v1113
          %v1146 = vunpack.c.l.b16 %v1114
          %v1147 = vunpack.c.l.b16 %v1115
          %v1148 = vunpack.c.l.b16 %v1116
          %v1149 = vunpack.c.l.b16 %v1117
          %v1150 = vunpack.c.l.b16 %v1118
          %v1151 = vunpack.c.l.b16 %v1119
          %v1152 = vunpack.c.l.b16 %v1120
          %v1153 = vunpack.c.l.b16 %v1121
          %v1154 = vpack.c.b16 %v1139, %v1138
          %v1155 = vpack.c.b16 %v1141, %v1140
          %v1156 = vpack.c.b16 %v1143, %v1142
          %v1157 = vpack.c.b16 %v1145, %v1144
          %v1158 = vpack.c.b16 %v1147, %v1146
          %v1159 = vpack.c.b16 %v1149, %v1148
          %v1160 = vpack.c.b16 %v1151, %v1150
          %v1161 = vpack.c.b16 %v1153, %v1152
          %1170 = vmatprep.subr.bf16.mxu0 0
          %1171 = vmatpush1.bf16.msra.mxu0 %v1161
          %1172 = vmatprep.subr.bf16.mxu0 0
          %1173 = vmatpush1.bf16.msra.mxu0 %v1160
          %1174 = vmatprep.subr.bf16.mxu0 0
          %1175 = vmatpush1.bf16.msra.mxu0 %v1159
          %1176 = vmatprep.subr.bf16.mxu0 0
          %1177 = vmatpush1.bf16.msra.mxu0 %v1158
          %1178 = vmatprep.subr.bf16.mxu0 0
          %1179 = vmatpush1.bf16.msra.mxu0 %v1157
          %1180 = vmatprep.subr.bf16.mxu0 0
          %1181 = vmatpush1.bf16.msra.mxu0 %v1156
          %1182 = vmatprep.subr.bf16.mxu0 0
          %1183 = vmatpush1.bf16.msra.mxu0 %v1155
          %1184 = vmatprep.subr.bf16.mxu0 0
          %1185 = vmatpush1.bf16.msra.mxu0 %v1154
          %1186 = vmatprep.subr.bf16.mxu0 0
          %1187 = vmatpush2.bf16.msra.mxu0 0
          %1188 = vmatprep.subr.bf16.mxu0 0
          %1189 = vmatpush2.bf16.msra.mxu0 0
          %1190 = vmatprep.subr.bf16.mxu0 0
          %1191 = vmatpush2.bf16.msra.mxu0 0
          %1192 = vmatprep.subr.bf16.mxu0 0
          %1193 = vmatpush2.bf16.msra.mxu0 0
          %1194 = vmatprep.subr.bf16.mxu0 0
          %1195 = vmatpush2.bf16.msra.mxu0 0
          %1196 = vmatprep.subr.bf16.mxu0 0
          %1197 = vmatpush2.bf16.msra.mxu0 0
          %1198 = vmatprep.subr.bf16.mxu0 0
          %1199 = vmatpush2.bf16.msra.mxu0 0
          %1200 = vmatprep.subr.bf16.mxu0 0
          %1201 = vmatpush2.bf16.msra.mxu0 0
          %1202 = vmatprep.mubr.bf16.mxu0 0
          %1203 = vmatmul.mubr.bf16.gmra.mxu0 %v1098
          %v1204 = vpop.f32.mrf.mxu0
          %v1205 = vadd.f32 0.0, %v1204
          %v1206 = vpop.f32.mrf.mxu0
          %v1207 = vpop.f32.mrf.mxu0
          %v1208 = vadd.f32 0.0, %v1207
          %v1209 = vpop.f32.mrf.mxu0
          %1210 = vmatprep.mubr.bf16.mxu0 0
          %1211 = vmatmul.mubr.bf16.gmra.mxu0 %v1099
          %v1212 = vpop.f32.mrf.mxu0
          %v1213 = vadd.f32 0.0, %v1212
          %v1214 = vpop.f32.mrf.mxu0
          %v1215 = vpop.f32.mrf.mxu0
          %v1216 = vadd.f32 0.0, %v1215
          %v1217 = vpop.f32.mrf.mxu0
          %1218 = vmatprep.mubr.bf16.mxu0 0
          %1219 = vmatmul.mubr.bf16.gmra.mxu0 %v1100
          %v1220 = vpop.f32.mrf.mxu0
          %v1221 = vadd.f32 0.0, %v1220
          %v1222 = vpop.f32.mrf.mxu0
          %v1223 = vpop.f32.mrf.mxu0
          %v1224 = vadd.f32 0.0, %v1223
          %v1225 = vpop.f32.mrf.mxu0
          %1226 = vmatprep.mubr.bf16.mxu0 0
          %1227 = vmatmul.mubr.bf16.gmra.mxu0 %v1101
          %v1228 = vpop.f32.mrf.mxu0
          %v1229 = vadd.f32 0.0, %v1228
          %v1230 = vpop.f32.mrf.mxu0
          %v1231 = vpop.f32.mrf.mxu0
          %v1232 = vadd.f32 0.0, %v1231
          %v1233 = vpop.f32.mrf.mxu0
          %1234 = vmatprep.mubr.bf16.mxu0 0
          %1235 = vmatmul.mubr.bf16.gmra.mxu0 %v1102
          %v1236 = vpop.f32.mrf.mxu0
          %v1237 = vadd.f32 0.0, %v1236
          %v1238 = vpop.f32.mrf.mxu0
          %v1239 = vpop.f32.mrf.mxu0
          %v1240 = vadd.f32 0.0, %v1239
          %v1241 = vpop.f32.mrf.mxu0
          %1242 = vmatprep.mubr.bf16.mxu0 0
          %1243 = vmatmul.mubr.bf16.gmra.mxu0 %v1103
          %v1244 = vpop.f32.mrf.mxu0
          %v1245 = vadd.f32 0.0, %v1244
          %v1246 = vpop.f32.mrf.mxu0
          %v1247 = vpop.f32.mrf.mxu0
          %v1248 = vadd.f32 0.0, %v1247
          %v1249 = vpop.f32.mrf.mxu0
          %1250 = vmatprep.mubr.bf16.mxu0 0
          %1251 = vmatmul.mubr.bf16.gmra.mxu0 %v1104
          %v1252 = vpop.f32.mrf.mxu0
          %v1253 = vadd.f32 0.0, %v1252
          %v1254 = vpop.f32.mrf.mxu0
          %v1255 = vpop.f32.mrf.mxu0
          %v1256 = vadd.f32 0.0, %v1255
          %v1257 = vpop.f32.mrf.mxu0
          %1258 = vmatprep.mubr.bf16.mxu0 0
          %1259 = vmatmul.mubr.bf16.gmra.mxu0 %v1105
          %v1260 = vpop.f32.mrf.mxu0
          %v1261 = vadd.f32 0.0, %v1260
          %v1262 = vpop.f32.mrf.mxu0
          %v1263 = vpop.f32.mrf.mxu0
          %v1264 = vadd.f32 0.0, %v1263
          %v1265 = vpop.f32.mrf.mxu0
          %1266 = vdwg.mxu0
          %v1267 = vpack.c.bf16 %v1208, %v1205
          %v1268 = vpack.c.bf16 %v1216, %v1213
          %v1269 = vpack.c.bf16 %v1224, %v1221
          %v1270 = vpack.c.bf16 %v1232, %v1229
          %v1271 = vpack.c.bf16 %v1240, %v1237
          %v1272 = vpack.c.bf16 %v1248, %v1245
          %v1273 = vpack.c.bf16 %v1256, %v1253
          %v1274 = vpack.c.bf16 %v1264, %v1261
          %v1283 = vunpack.c.l.b16 %v1267
          %v1284 = vunpack.c.h.b16 %v1267
          %v1285 = vunpack.c.l.b16 %v1268
          %v1286 = vunpack.c.h.b16 %v1268
          %v1287 = vunpack.c.l.b16 %v1269
          %v1288 = vunpack.c.h.b16 %v1269
          %v1289 = vunpack.c.l.b16 %v1270
          %v1290 = vunpack.c.h.b16 %v1270
          %v1291 = vunpack.c.l.b16 %v1271
          %v1292 = vunpack.c.h.b16 %v1271
          %v1293 = vunpack.c.l.b16 %v1272
          %v1294 = vunpack.c.h.b16 %v1272
          %v1295 = vunpack.c.l.b16 %v1273
          %v1296 = vunpack.c.h.b16 %v1273
          %v1297 = vunpack.c.l.b16 %v1274
          %v1298 = vunpack.c.h.b16 %v1274
          %v1299 = vpack.c.b16 %v1283, %v1283
          %v1300 = vpack.c.b16 %v1284, %v1284
          %v1301 = vpack.c.b16 %v1285, %v1285
          %v1302 = vpack.c.b16 %v1286, %v1286
          %v1303 = vpack.c.b16 %v1287, %v1287
          %v1304 = vpack.c.b16 %v1288, %v1288
          %v1305 = vpack.c.b16 %v1289, %v1289
          %v1306 = vpack.c.b16 %v1290, %v1290
          %v1307 = vpack.c.b16 %v1291, %v1291
          %v1308 = vpack.c.b16 %v1292, %v1292
          %v1309 = vpack.c.b16 %v1293, %v1293
          %v1310 = vpack.c.b16 %v1294, %v1294
          %v1311 = vpack.c.b16 %v1295, %v1295
          %v1312 = vpack.c.b16 %v1296, %v1296
          %v1313 = vpack.c.b16 %v1297, %v1297
          %v1314 = vpack.c.b16 %v1298, %v1298
          %1331 = vst [vmem:[%s454] sm:$0xf] %v1299
          %1332 = vst [vmem:[%s454 + $0x4] sm:$0xf] %v1300
          %1333 = vst [vmem:[%s454 + $0x8] sm:$0xf] %v1301
          %1334 = vst [vmem:[%s454 + $0xc] sm:$0xf] %v1302
          %1335 = vst [vmem:[%s454 + $0x10] sm:$0xf] %v1303
          %1336 = vst [vmem:[%s454 + $0x14] sm:$0xf] %v1304
          %1337 = vst [vmem:[%s454 + $0x18] sm:$0xf] %v1305
          %1338 = vst [vmem:[%s454 + $0x1c] sm:$0xf] %v1306
          %1339 = vst [vmem:[%s454 + $0x20] sm:$0xf] %v1307
          %1340 = vst [vmem:[%s454 + $0x24] sm:$0xf] %v1308
          %1341 = vst [vmem:[%s454 + $0x28] sm:$0xf] %v1309
          %1342 = vst [vmem:[%s454 + $0x2c] sm:$0xf] %v1310
          %1343 = vst [vmem:[%s454 + $0x30] sm:$0xf] %v1311
          %1344 = vst [vmem:[%s454 + $0x34] sm:$0xf] %v1312
          %1345 = vst [vmem:[%s454 + $0x38] sm:$0xf] %v1313
          %1346 = vst [vmem:[%s454 + $0x3c] sm:$0xf] %v1314
        $region105: #{tpu_custom_call.1} parent=80 // pred_fallthru
          _
        %s1347 = sand.u32 %s187, 1
        %s1348 = scalar_lea.sflag [#allocation6], %s1347
        %s1349 = sand.u32 %s187, 1
        %s1350 = smul.addr %s1349, 64
        %s1351 = scalar_lea.vmem [#allocation10], %s1350
        // Predicated region
        $region106: #{tpu_custom_call.1} parent=80 // pred_check
          %p1352 = pneg %p197
        $region107: #{tpu_custom_call.1} parent=80 // pred_check_branch
          %1354 = sbr.rel (%p1352) target = $region109
        $region108: #{tpu_custom_call.1} parent=80 // pred_region
          %s1355 = smul.u32 16, %s28
          %s1357 = ssub.s32 1024, 1024
          %1358 = vsyncadd %s1348, %s1357
          %s1359 = smul.addr %s1355, 64
          %s1360 = scalar_lea.hbm %s6, %s1359
          %s1361 = sshll.u32 %s1351, 4
          %s1362 = int_to_ptr.vmem [resolvable:$true] %s1361
          %1367 = dma.vmem_to_hbm [thread:$0]  %s1362, 1024, %s1360, %s1348, 64, 64, 4
        $region109: #{tpu_custom_call.1} parent=80 // pred_fallthru
          _
      $region81: #{tpu_custom_call.1} parent=5 // pred_fallthru
        _
      %p1368 = scmp.le.s32.totalorder 2, %s19
      // Predicated region
      $region110: #{tpu_custom_call.1} parent=5 // pred_check
        %p1369 = pneg %p1368
      $region111: #{tpu_custom_call.1} parent=5 // pred_check_branch
        %1371 = sbr.rel (%p1369) target = $region113
      $region112: #{tpu_custom_call.1} parent=5 // pred_region
        %s1372 = ssub.s32 %s19, 2
        // Predicated region
        $region114: #{tpu_custom_call.1} parent=112 // pred_check
          %p1373 = pneg %p203
        $region115: #{tpu_custom_call.1} parent=112 // pred_check_branch
          %1375 = sbr.rel (%p1373) target = $region117
        $region116: #{tpu_custom_call.1} parent=112 // pred_region
          %s1376 = sand.u32 %s188, 1
          %s1377 = scalar_lea.sflag [#allocation6], %s1376
          %s1378 = sand.u32 %s188, 1
          %s1379 = smul.addr %s1378, 64
          %s1380 = scalar_lea.vmem [#allocation10], %s1379
          %1381 = dma.done %s1377, 1024
        $region117: #{tpu_custom_call.1} parent=112 // pred_fallthru
          _
      $region113: #{tpu_custom_call.1} parent=5 // pred_fallthru
        _
    $region6: #{tpu_custom_call.1} parent=1 // loop_footer
      %s23 = sadd.s32 1, %s19
    $region7: #{tpu_custom_call.1} parent=1 // loop_footer_branch
      %18 = sbr.rel target = $region3
    $region8: #{tpu_custom_call.1} parent=1 // loop_exit
      _
    %1382 = vsyncpa [#allocation5], 1
    %s1383 = scalar_lea.sflag [#allocation5], 1
    %1384 = vsyncpa %s1383, 1
    %1385 = vsyncpa [#allocation8], 1
    %1386 = vsyncpa [#allocation6], 1
    %s1387 = scalar_lea.sflag [#allocation6], 1
    %1388 = vsyncpa %s1387, 1

</llo_original>
